<compile_context>
chip_gen: v7x
topology: tpu7x:2x2x1
jax: 0.10.0
libtpu: 0.0.40
codegen_flags: <defaults>
</compile_context>

<pallas_src>
import functools

import jax
import jax.numpy as jnp
import numpy as np
from jax import lax
from jax.experimental import pallas as pl
from jax.experimental.pallas import tpu as pltpu


def stride_generator(N, reverse=False):
    strides = [1, 2] * 10
    return list(reversed(strides[:N])) if reverse else strides[:N]


# ----------------------------------------------------------------------------
# Host-side constant builders (static shapes -> tiny constant tensors)
# ----------------------------------------------------------------------------
def _tap_masks(H, W):
    """(9, H*W) 0/1 validity masks, tap order (dy, dx), for a 3x3 'same' conv."""
    P = H * W
    hh = np.arange(P) // W
    ww = np.arange(P) % W
    m = np.ones((9, P), np.float32)
    t = 0
    for dy in range(3):
        for dx in range(3):
            valid = np.ones(P, np.bool_)
            if dy == 0:
                valid &= hh >= 1
            if dy == 2:
                valid &= hh <= H - 2
            if dx == 0:
                valid &= ww >= 1
            if dx == 2:
                valid &= ww <= W - 2
            m[t] = valid
            t += 1
    return jnp.asarray(m)


def _upsample_matrix(H, W):
    """(H*W, 4*H*W) 0/1 matrix: x_flat @ S == zero-stuffed x at (2H, 2W) resolution."""
    Pin, Pout = H * W, 4 * H * W
    S = np.zeros((Pin, Pout), np.float32)
    rows = np.arange(Pin)
    cols = 2 * (rows // W) * (2 * W) + 2 * (rows % W)
    S[rows, cols] = 1.0
    return jnp.asarray(S)


# ----------------------------------------------------------------------------
# In-kernel helpers (operate on VMEM values)
# ----------------------------------------------------------------------------
def _conv3x3_flat(x2d, w2d, mask, W):
    """3x3 'same' conv on a channels-first, spatially-flattened tile.

    x2d : (Cin, P) activation, P = H*W (flattened NCHW spatial)
    w2d : (Cout, 9*Cin) weights, K ordered (dy, dx, ci)
    mask: (9, P) border-validity masks (0/1)
    W   : static image width
    Returns (Cout, P) f32.  Shifts are XLU lane rotations + mask multiplies,
    reduced with a single K=9*Cin MXU matmul (lane-dense N=P output).
    """
    _, P = x2d.shape
    taps = []
    t = 0
    for dy in range(3):
        for dx in range(3):
            s = (dy - 1) * W + (dx - 1)          # flat offset of this tap
            if s % P == 0:
                shifted = x2d
            else:
                shifted = pltpu.roll(x2d, shift=(-s) % P, axis=1)
            if dy == 1 and dx == 1:              # centre tap never hits a border
                taps.append(shifted)
            else:
                taps.append(shifted * mask[t:t + 1, :])
            t += 1
    im2col = jnp.concatenate(taps, axis=0)       # (9*Cin, P), K on sublanes
    return jnp.dot(w2d, im2col, preferred_element_type=jnp.float32)


def _gn2_lrelu(y, gamma, beta):
    """GroupNorm(num_groups=2, eps=1e-5) + LeakyReLU(0.2) on a (C, P) tile."""
    C, P = y.shape
    half = C // 2
    cnt = float(half * P)
    y0, y1 = y[:half], y[half:]                  # static channel slices
    m0 = jnp.sum(y0) / cnt
    m1 = jnp.sum(y1) / cnt
    v0 = jnp.maximum(jnp.sum(y0 * y0) / cnt - m0 * m0, 0.0)
    v1 = jnp.maximum(jnp.sum(y1 * y1) / cnt - m1 * m1, 0.0)
    grp0 = lax.broadcasted_iota(jnp.int32, (C, 1), 0) < half
    mean = jnp.where(grp0, m0, m1)
    inv = jnp.where(grp0, lax.rsqrt(v0 + 1e-5), lax.rsqrt(v1 + 1e-5))
    z = (y - mean) * inv * gamma + beta
    return jnp.where(z >= 0.0, z, 0.2 * z)


# ----------------------------------------------------------------------------
# Fused kernels (one grid step == one batch element == one full ConvSC layer)
# ----------------------------------------------------------------------------
def _convsc_s1_kernel(x_ref, m_ref, w_ref, b_ref, g_ref, bt_ref, o_ref, *, W):
    # Conv2d(3x3, s=1, p=1) + bias + GN(2) + LeakyReLU
    y = _conv3x3_flat(x_ref[0], w_ref[...], m_ref[...], W) + b_ref[...]
    o_ref[0] = _gn2_lrelu(y, g_ref[...], bt_ref[...]).astype(o_ref.dtype)


def _convsc_t2_kernel(x_ref, s_ref, m_ref, w_ref, b_ref, g_ref, bt_ref, o_ref, *, W):
    # ConvTranspose2d(3x3, s=2, p=1, op=1) + bias + GN(2) + LeakyReLU.
    # Zero-stuff the compact input to output resolution inside the kernel
    # (no dilated tensor in HBM), then run the standard 3x3 conv path.
    xd = jnp.dot(x_ref[0], s_ref[...], preferred_element_type=jnp.float32)
    y = _conv3x3_flat(xd, w_ref[...], m_ref[...], W) + b_ref[...]
    o_ref[0] = _gn2_lrelu(y, g_ref[...], bt_ref[...]).astype(o_ref.dtype)


def _convsc_last_kernel(x_ref, e_ref, m_ref, wx_ref, we_ref, b_ref, g_ref,
                        bt_ref, rw_ref, rb_ref, o_ref, *, W):
    # Last ConvSC over concat([hid, enc1], channel) realized as split-K sum of two
    # matmuls (no concat materialized), + bias + GN + LeakyReLU + fused 1x1 readout.
    y = (_conv3x3_flat(x_ref[0], wx_ref[...], m_ref[...], W)
         + _conv3x3_flat(e_ref[0], we_ref[...], m_ref[...], W)
         + b_ref[...])
    z = _gn2_lrelu(y, g_ref[...], bt_ref[...])
    out = jnp.dot(rw_ref[...], z, preferred_element_type=jnp.float32) + rb_ref[...]
    o_ref[0] = out.astype(o_ref.dtype)


# ----------------------------------------------------------------------------
# pallas_call wrappers (activations live as (N, C, H*W) == flat NCHW)
# ----------------------------------------------------------------------------
def _replicated(shape):
    nd = len(shape)
    return pl.BlockSpec(shape, lambda n: (0,) * nd)


def convsc_s1_pallas(x, H, W, p):
    N, Cin, P = x.shape
    Cout = p["w2d"].shape[0]
    mask = _tap_masks(H, W)
    return pl.pallas_call(
        functools.partial(_convsc_s1_kernel, W=W),
        out_shape=jax.ShapeDtypeStruct((N, Cout, P), jnp.float32),
        grid=(N,),
        in_specs=[
            pl.BlockSpec((1, Cin, P), lambda n: (n, 0, 0)),
            _replicated((9, P)),
            _replicated((Cout, 9 * Cin)),
            _replicated((Cout, 1)),
            _replicated((Cout, 1)),
            _replicated((Cout, 1)),
        ],
        out_specs=pl.BlockSpec((1, Cout, P), lambda n: (n, 0, 0)),
        compiler_params=pltpu.CompilerParams(dimension_semantics=("parallel",)),
    )(x, mask, p["w2d"], p["b2"], p["g2"], p["bt2"])


def convsc_t2_pallas(x, Hin, Win, p):
    N, Cin, Pin = x.shape
    Hout, Wout = 2 * Hin, 2 * Win
    Pout = Hout * Wout
    Cout = p["w2d"].shape[0]
    S = _upsample_matrix(Hin, Win)
    mask = _tap_masks(Hout, Wout)
    return pl.pallas_call(
        functools.partial(_convsc_t2_kernel, W=Wout),
        out_shape=jax.ShapeDtypeStruct((N, Cout, Pout), jnp.float32),
        grid=(N,),
        in_specs=[
            pl.BlockSpec((1, Cin, Pin), lambda n: (n, 0, 0)),
            _replicated((Pin, Pout)),
            _replicated((9, Pout)),
            _replicated((Cout, 9 * Cin)),
            _replicated((Cout, 1)),
            _replicated((Cout, 1)),
            _replicated((Cout, 1)),
        ],
        out_specs=pl.BlockSpec((1, Cout, Pout), lambda n: (n, 0, 0)),
        compiler_params=pltpu.CompilerParams(dimension_semantics=("parallel",)),
    )(x, S, mask, p["w2d"], p["b2"], p["g2"], p["bt2"])


def convsc_last_pallas(x, e, H, W, p, rw, rb2):
    N, Chid, P = x.shape
    Cro = rw.shape[0]
    mask = _tap_masks(H, W)
    return pl.pallas_call(
        functools.partial(_convsc_last_kernel, W=W),
        out_shape=jax.ShapeDtypeStruct((N, Cro, P), jnp.float32),
        grid=(N,),
        in_specs=[
            pl.BlockSpec((1, Chid, P), lambda n: (n, 0, 0)),
            pl.BlockSpec((1, Chid, P), lambda n: (n, 0, 0)),
            _replicated((9, P)),
            _replicated((Chid, 9 * Chid)),
            _replicated((Chid, 9 * Chid)),
            _replicated((Chid, 1)),
            _replicated((Chid, 1)),
            _replicated((Chid, 1)),
            _replicated((Cro, Chid)),
            _replicated((Cro, 1)),
        ],
        out_specs=pl.BlockSpec((1, Cro, P), lambda n: (n, 0, 0)),
        compiler_params=pltpu.CompilerParams(dimension_semantics=("parallel",)),
    )(x, e, mask, p["w2d_x"], p["w2d_e"], p["b2"], p["g2"], p["bt2"], rw, rb2)


# ----------------------------------------------------------------------------
# Decoder forward (Pallas path).  NCHW in, NCHW out, no transposes.
# ----------------------------------------------------------------------------
def decoder_forward_pallas(hid_nchw, enc1_nchw, params):
    N, C, H, W = hid_nchw.shape
    x = hid_nchw.reshape(N, C, H * W)            # free reshape of NCHW
    h, w = H, W
    for p in params["dec"][:-1]:
        if p["stride"] == 1:
            x = convsc_s1_pallas(x, h, w, p)
        else:
            x = convsc_t2_pallas(x, h, w, p)
            h, w = 2 * h, 2 * w
    Ne, Ce, He, We = enc1_nchw.shape
    e = enc1_nchw.reshape(Ne, Ce, He * We)       # free reshape
    # The reversed stride list always ends with 1 -> last ConvSC is a plain conv.
    y = convsc_last_pallas(x, e, h, w, params["dec"][-1],
                           params["ro_w_mat"], params["ro_b2"])
    C_out = params["ro_w_mat"].shape[0]
    return y.reshape(N, C_out, h, w)             # free reshape back to NCHW


# ----------------------------------------------------------------------------
# Deterministic parameter init (PyTorch layouts + Pallas-layout derivatives)
# ----------------------------------------------------------------------------
def init_decoder_params(key, C_hid, C_out, N_S):
    strides = stride_generator(N_S, reverse=True)
    dec = []
    for i, s in enumerate(strides):
        C_in = C_hid if i < len(strides) - 1 else 2 * C_hid
        transpose = (s != 1)  # ConvSC forces transpose=False when stride == 1
        key, k1, k2, k3, k4 = jax.random.split(key, 5)
        if transpose:
            w_pt = 0.2 * jax.random.normal(k1, (C_in, C_hid, 3, 3), jnp.float32)  # IOHW
            # equivalent conv weight (on the zero-stuffed input):
            #   w_eq[co, ci, kh, kw] = w_pt[ci, co, 2-kh, 2-kw]
            w_oihw = jnp.transpose(jnp.flip(w_pt, axis=(2, 3)), (1, 0, 2, 3))
        else:
            w_pt = 0.2 * jax.random.normal(k1, (C_hid, C_in, 3, 3), jnp.float32)  # OIHW
            w_oihw = w_pt
        # (Cout, 9*Cin) with K ordered (dy, dx, ci) to match the kernel's im2col.
        w2d = jnp.transpose(w_oihw, (0, 2, 3, 1)).reshape(C_hid, 9 * C_in)
        b = 0.1 * jax.random.normal(k2, (C_hid,), jnp.float32)
        gamma = 1.0 + 0.1 * jax.random.normal(k3, (C_hid,), jnp.float32)
        beta = 0.1 * jax.random.normal(k4, (C_hid,), jnp.float32)
        layer = dict(stride=s, transpose=transpose, w_pt=w_pt,
                     b=b, gamma=gamma, beta=beta,
                     b2=b.reshape(-1, 1), g2=gamma.reshape(-1, 1),
                     bt2=beta.reshape(-1, 1))
        if i == len(strides) - 1:
            # split-K weights for the implicit concat([hid, enc1]) of the last ConvSC
            w3 = w2d.reshape(C_hid, 9, C_in)
            layer["w2d_x"] = w3[:, :, :C_hid].reshape(C_hid, 9 * C_hid)
            layer["w2d_e"] = w3[:, :, C_hid:].reshape(C_hid, 9 * C_hid)
        else:
            layer["w2d"] = w2d
        dec.append(layer)
    key, k1, k2 = jax.random.split(key, 3)
    ro_w = 0.2 * jax.random.normal(k1, (C_out, C_hid, 1, 1), jnp.float32)
    ro_b = 0.1 * jax.random.normal(k2, (C_out,), jnp.float32)
    return dict(dec=dec, ro_w=ro_w, ro_b=ro_b,
                ro_w_mat=ro_w[:, :, 0, 0], ro_b2=ro_b.reshape(-1, 1))


# ----------------------------------------------------------------------------
# Pure-JAX reference (NCHW, PyTorch-layout weights) for validation
# ----------------------------------------------------------------------------
def _ref_gn_lrelu(x, gamma, beta):
    N, C, H, W = x.shape
    xg = x.reshape(N, 2, C // 2, H, W)
    m = xg.mean(axis=(2, 3, 4), keepdims=True)
    v = ((xg - m) ** 2).mean(axis=(2, 3, 4), keepdims=True)
    xn = ((xg - m) / jnp.sqrt(v + 1e-5)).reshape(N, C, H, W)
    y = xn * gamma[None, :, None, None] + beta[None, :, None, None]
    return jnp.where(y >= 0.0, y, 0.2 * y)


def _ref_convsc(x, p):
    dn = ("NCHW", "OIHW", "NCHW")
    if p["stride"] == 1:
        y = lax.conv_general_dilated(x, p["w_pt"], (1, 1), ((1, 1), (1, 1)),
                                     dimension_numbers=dn)
    else:
        w_oihw = jnp.flip(jnp.transpose(p["w_pt"], (1, 0, 2, 3)), axis=(2, 3))
        y = lax.conv_general_dilated(x, w_oihw, (1, 1), ((1, 2), (1, 2)),
                                     lhs_dilation=(2, 2), dimension_numbers=dn)
    y = y + p["b"][None, :, None, None]
    return _ref_gn_lrelu(y, p["gamma"], p["beta"])


def decoder_forward_ref(hid, enc1, params):
    x = hid
    for p in params["dec"][:-1]:
        x = _ref_convsc(x, p)
    x = _ref_convsc(jnp.concatenate([x, enc1], axis=1), params["dec"][-1])
    y = lax.conv_general_dilated(x, params["ro_w"], (1, 1), ((0, 0), (0, 0)),
                                 dimension_numbers=("NCHW", "OIHW", "NCHW"))
    return y + params["ro_b"][None, :, None, None]


# ----------------------------------------------------------------------------
if __name__ == "__main__":
    N, C_hid, C_out, N_S = 2, 8, 4, 2
    H = W = 8  # hid spatial; one stride-2 transpose conv -> enc1/output at 16x16

    key = jax.random.PRNGKey(0)
    key, kh, ke = jax.random.split(key, 3)
    params = init_decoder_params(key, C_hid, C_out, N_S)

    hid = jax.random.normal(kh, (N, C_hid, H, W), jnp.float32)
    enc1 = jax.random.normal(ke, (N, C_hid, 2 * H, 2 * W), jnp.float32)

    fwd = jax.jit(lambda h, e: decoder_forward_pallas(h, e, params))
    y = jax.block_until_ready(fwd(hid, enc1))
    assert y.shape == (N, C_out, 2 * H, 2 * W), y.shape

    y_ref = jax.block_until_ready(decoder_forward_ref(hid, enc1, params))
    np.testing.assert_allclose(np.asarray(y), np.asarray(y_ref),
                               rtol=2e-3, atol=2e-3)
    print("KERNEL_OK")
</pallas_src>

<mosaic_0001>
module attributes {stable_mosaic.version = 11 : i64} {
  func.func @_convsc_t2_kernel(%arg0: i32, %arg1: memref<1x8x64xf32, #tpu.memory_space<vmem>>, %arg2: memref<64x256xf32, #tpu.memory_space<vmem>>, %arg3: memref<9x256xf32, #tpu.memory_space<vmem>>, %arg4: memref<8x72xf32, #tpu.memory_space<vmem>>, %arg5: memref<8x1xf32, #tpu.memory_space<vmem>>, %arg6: memref<8x1xf32, #tpu.memory_space<vmem>>, %arg7: memref<8x1xf32, #tpu.memory_space<vmem>>, %arg8: memref<1x8x256xf32, #tpu.memory_space<vmem>>) attributes {dimension_semantics = [#tpu.dimension_semantics<parallel>], iteration_bounds = array<i64: 2>, scalar_prefetch = 0 : i64, scratch_operands = 0 : i64, tpu.core_type = #tpu.core_type<tc>, window_params = [{transform_indices = @transform_0, window_bounds = array<i64: 1, 8, 64>}, {pipeline_mode = #tpu.pipeline_mode<synchronous>, transform_indices = @transform_1, window_bounds = array<i64: 64, 256>}, {pipeline_mode = #tpu.pipeline_mode<synchronous>, transform_indices = @transform_2, window_bounds = array<i64: 9, 256>}, {pipeline_mode = #tpu.pipeline_mode<synchronous>, transform_indices = @transform_3, window_bounds = array<i64: 8, 72>}, {pipeline_mode = #tpu.pipeline_mode<synchronous>, transform_indices = @transform_4, window_bounds = array<i64: 8, 1>}, {pipeline_mode = #tpu.pipeline_mode<synchronous>, transform_indices = @transform_5, window_bounds = array<i64: 8, 1>}, {pipeline_mode = #tpu.pipeline_mode<synchronous>, transform_indices = @transform_6, window_bounds = array<i64: 8, 1>}, {transform_indices = @transform_7, window_bounds = array<i64: 1, 8, 256>}]} {
    %c0 = arith.constant 0 : index
    %c0_0 = arith.constant 0 : index
    %c0_1 = arith.constant 0 : index
    %0 = vector.load %arg1[%c0, %c0_0, %c0_1] : memref<1x8x64xf32, #tpu.memory_space<vmem>>, vector<1x8x64xf32>
    %1 = vector.shape_cast %0 : vector<1x8x64xf32> to vector<8x64xf32>
    %c0_2 = arith.constant 0 : index
    %c0_3 = arith.constant 0 : index
    %2 = vector.load %arg2[%c0_2, %c0_3] : memref<64x256xf32, #tpu.memory_space<vmem>>, vector<64x256xf32>
    %cst = arith.constant dense<0.000000e+00> : vector<8x256xf32>
    %3 = tpu.matmul %1, %2, %cst {dimension_numbers = #tpu.dot_dimension_numbers<[1], [0], [0], [1], [0, 0, 1, 1], [], []>} : vector<8x64xf32>, vector<64x256xf32>, vector<8x256xf32> -> vector<8x256xf32>
    %c0_4 = arith.constant 0 : index
    %c0_5 = arith.constant 0 : index
    %4 = vector.load %arg4[%c0_4, %c0_5] : memref<8x72xf32, #tpu.memory_space<vmem>>, vector<8x72xf32>
    %c0_6 = arith.constant 0 : index
    %c0_7 = arith.constant 0 : index
    %5 = vector.load %arg3[%c0_6, %c0_7] : memref<9x256xf32, #tpu.memory_space<vmem>>, vector<9x256xf32>
    %c17_i32 = arith.constant 17 : i32
    %6 = tpu.dynamic_rotate %3 by %c17_i32 dim 1 : vector<8x256xf32>, i32 -> vector<8x256xf32>
    %7 = vector.extract_strided_slice %5 {offsets = [0, 0], sizes = [1, 256], strides = [1, 1]} : vector<9x256xf32> to vector<1x256xf32>
    %8 = vector.broadcast %7 : vector<1x256xf32> to vector<8x256xf32>
    %9 = arith.mulf %6, %8 : vector<8x256xf32>
    %c16_i32 = arith.constant 16 : i32
    %10 = tpu.dynamic_rotate %3 by %c16_i32 dim 1 : vector<8x256xf32>, i32 -> vector<8x256xf32>
    %11 = vector.extract_strided_slice %5 {offsets = [1, 0], sizes = [1, 256], strides = [1, 1]} : vector<9x256xf32> to vector<1x256xf32>
    %12 = vector.broadcast %11 : vector<1x256xf32> to vector<8x256xf32>
    %13 = arith.mulf %10, %12 : vector<8x256xf32>
    %c15_i32 = arith.constant 15 : i32
    %14 = tpu.dynamic_rotate %3 by %c15_i32 dim 1 : vector<8x256xf32>, i32 -> vector<8x256xf32>
    %15 = vector.extract_strided_slice %5 {offsets = [2, 0], sizes = [1, 256], strides = [1, 1]} : vector<9x256xf32> to vector<1x256xf32>
    %16 = vector.broadcast %15 : vector<1x256xf32> to vector<8x256xf32>
    %17 = arith.mulf %14, %16 : vector<8x256xf32>
    %c1_i32 = arith.constant 1 : i32
    %18 = tpu.dynamic_rotate %3 by %c1_i32 dim 1 : vector<8x256xf32>, i32 -> vector<8x256xf32>
    %19 = vector.extract_strided_slice %5 {offsets = [3, 0], sizes = [1, 256], strides = [1, 1]} : vector<9x256xf32> to vector<1x256xf32>
    %20 = vector.broadcast %19 : vector<1x256xf32> to vector<8x256xf32>
    %21 = arith.mulf %18, %20 : vector<8x256xf32>
    %c255_i32 = arith.constant 255 : i32
    %22 = tpu.dynamic_rotate %3 by %c255_i32 dim 1 : vector<8x256xf32>, i32 -> vector<8x256xf32>
    %23 = vector.extract_strided_slice %5 {offsets = [5, 0], sizes = [1, 256], strides = [1, 1]} : vector<9x256xf32> to vector<1x256xf32>
    %24 = vector.broadcast %23 : vector<1x256xf32> to vector<8x256xf32>
    %25 = arith.mulf %22, %24 : vector<8x256xf32>
    %c241_i32 = arith.constant 241 : i32
    %26 = tpu.dynamic_rotate %3 by %c241_i32 dim 1 : vector<8x256xf32>, i32 -> vector<8x256xf32>
    %27 = vector.extract_strided_slice %5 {offsets = [6, 0], sizes = [1, 256], strides = [1, 1]} : vector<9x256xf32> to vector<1x256xf32>
    %28 = vector.broadcast %27 : vector<1x256xf32> to vector<8x256xf32>
    %29 = arith.mulf %26, %28 : vector<8x256xf32>
    %c240_i32 = arith.constant 240 : i32
    %30 = tpu.dynamic_rotate %3 by %c240_i32 dim 1 : vector<8x256xf32>, i32 -> vector<8x256xf32>
    %31 = vector.extract_strided_slice %5 {offsets = [7, 0], sizes = [1, 256], strides = [1, 1]} : vector<9x256xf32> to vector<1x256xf32>
    %32 = vector.broadcast %31 : vector<1x256xf32> to vector<8x256xf32>
    %33 = arith.mulf %30, %32 : vector<8x256xf32>
    %c239_i32 = arith.constant 239 : i32
    %34 = tpu.dynamic_rotate %3 by %c239_i32 dim 1 : vector<8x256xf32>, i32 -> vector<8x256xf32>
    %35 = vector.extract_strided_slice %5 {offsets = [8, 0], sizes = [1, 256], strides = [1, 1]} : vector<9x256xf32> to vector<1x256xf32>
    %36 = vector.broadcast %35 : vector<1x256xf32> to vector<8x256xf32>
    %37 = arith.mulf %34, %36 : vector<8x256xf32>
    %38 = tpu.concatenate %9, %13, %17, %21, %3, %25, %29, %33, %37 in 0 : vector<8x256xf32>, vector<8x256xf32>, vector<8x256xf32>, vector<8x256xf32>, vector<8x256xf32>, vector<8x256xf32>, vector<8x256xf32>, vector<8x256xf32>, vector<8x256xf32> -> vector<72x256xf32>
    %cst_8 = arith.constant dense<0.000000e+00> : vector<8x256xf32>
    %39 = tpu.matmul %4, %38, %cst_8 {dimension_numbers = #tpu.dot_dimension_numbers<[1], [0], [0], [1], [0, 0, 1, 1], [], []>} : vector<8x72xf32>, vector<72x256xf32>, vector<8x256xf32> -> vector<8x256xf32>
    %c0_9 = arith.constant 0 : index
    %c0_10 = arith.constant 0 : index
    %40 = vector.load %arg5[%c0_9, %c0_10] : memref<8x1xf32, #tpu.memory_space<vmem>>, vector<8x1xf32>
    %41 = vector.broadcast %40 : vector<8x1xf32> to vector<8x256xf32>
    %42 = arith.addf %39, %41 : vector<8x256xf32>
    %c0_11 = arith.constant 0 : index
    %c0_12 = arith.constant 0 : index
    %43 = vector.load %arg6[%c0_11, %c0_12] : memref<8x1xf32, #tpu.memory_space<vmem>>, vector<8x1xf32>
    %c0_13 = arith.constant 0 : index
    %c0_14 = arith.constant 0 : index
    %44 = vector.load %arg7[%c0_13, %c0_14] : memref<8x1xf32, #tpu.memory_space<vmem>>, vector<8x1xf32>
    %45 = vector.extract_strided_slice %42 {offsets = [0, 0], sizes = [4, 256], strides = [1, 1]} : vector<8x256xf32> to vector<4x256xf32>
    %46 = vector.extract_strided_slice %42 {offsets = [4, 0], sizes = [4, 256], strides = [1, 1]} : vector<8x256xf32> to vector<4x256xf32>
    %47 = vector.shape_cast %45 : vector<4x256xf32> to vector<1x4x256xf32>
    %cst_15 = arith.constant dense<0.000000e+00> : vector<1xf32>
    %48 = vector.multi_reduction <add>, %47, %cst_15 [1, 2] : vector<1x4x256xf32> to vector<1xf32>
    %49 = vector.shape_cast %48 : vector<1xf32> to vector<1x1x1xf32>
    %50 = vector.extract %49[0, 0, 0] : f32 from vector<1x1x1xf32>
    %cst_16 = arith.constant 1.024000e+03 : f32
    %51 = arith.divf %50, %cst_16 : f32
    %52 = vector.shape_cast %46 : vector<4x256xf32> to vector<1x4x256xf32>
    %cst_17 = arith.constant dense<0.000000e+00> : vector<1xf32>
    %53 = vector.multi_reduction <add>, %52, %cst_17 [1, 2] : vector<1x4x256xf32> to vector<1xf32>
    %54 = vector.shape_cast %53 : vector<1xf32> to vector<1x1x1xf32>
    %55 = vector.extract %54[0, 0, 0] : f32 from vector<1x1x1xf32>
    %cst_18 = arith.constant 1.024000e+03 : f32
    %56 = arith.divf %55, %cst_18 : f32
    %57 = arith.mulf %45, %45 : vector<4x256xf32>
    %58 = vector.shape_cast %57 : vector<4x256xf32> to vector<1x4x256xf32>
    %cst_19 = arith.constant dense<0.000000e+00> : vector<1xf32>
    %59 = vector.multi_reduction <add>, %58, %cst_19 [1, 2] : vector<1x4x256xf32> to vector<1xf32>
    %60 = vector.shape_cast %59 : vector<1xf32> to vector<1x1x1xf32>
    %61 = vector.extract %60[0, 0, 0] : f32 from vector<1x1x1xf32>
    %cst_20 = arith.constant 1.024000e+03 : f32
    %62 = arith.divf %61, %cst_20 : f32
    %63 = arith.mulf %51, %51 : f32
    %64 = arith.subf %62, %63 : f32
    %cst_21 = arith.constant 0.000000e+00 : f32
    %65 = arith.maximumf %64, %cst_21 : f32
    %66 = arith.mulf %46, %46 : vector<4x256xf32>
    %67 = vector.shape_cast %66 : vector<4x256xf32> to vector<1x4x256xf32>
    %cst_22 = arith.constant dense<0.000000e+00> : vector<1xf32>
    %68 = vector.multi_reduction <add>, %67, %cst_22 [1, 2] : vector<1x4x256xf32> to vector<1xf32>
    %69 = vector.shape_cast %68 : vector<1xf32> to vector<1x1x1xf32>
    %70 = vector.extract %69[0, 0, 0] : f32 from vector<1x1x1xf32>
    %cst_23 = arith.constant 1.024000e+03 : f32
    %71 = arith.divf %70, %cst_23 : f32
    %72 = arith.mulf %56, %56 : f32
    %73 = arith.subf %71, %72 : f32
    %cst_24 = arith.constant 0.000000e+00 : f32
    %74 = arith.maximumf %73, %cst_24 : f32
    %75 = tpu.iota {dimensions = array<i32: 0>} : vector<8x1xi32>
    %c4_i32 = arith.constant 4 : i32
    %76 = vector.broadcast %c4_i32 : i32 to vector<8x1xi32>
    %77 = arith.cmpi slt, %75, %76 : vector<8x1xi32>
    %78 = vector.broadcast %51 : f32 to vector<8x1xf32>
    %79 = vector.broadcast %56 : f32 to vector<8x1xf32>
    %80 = arith.select %77, %78, %79 : vector<8x1xi1>, vector<8x1xf32>
    %cst_25 = arith.constant 9.99999974E-6 : f32
    %81 = arith.addf %65, %cst_25 : f32
    %82 = math.rsqrt %81 : f32
    %cst_26 = arith.constant 9.99999974E-6 : f32
    %83 = arith.addf %74, %cst_26 : f32
    %84 = math.rsqrt %83 : f32
    %85 = vector.broadcast %82 : f32 to vector<8x1xf32>
    %86 = vector.broadcast %84 : f32 to vector<8x1xf32>
    %87 = arith.select %77, %85, %86 : vector<8x1xi1>, vector<8x1xf32>
    %88 = vector.broadcast %80 : vector<8x1xf32> to vector<8x256xf32>
    %89 = arith.subf %42, %88 : vector<8x256xf32>
    %90 = vector.broadcast %87 : vector<8x1xf32> to vector<8x256xf32>
    %91 = arith.mulf %89, %90 : vector<8x256xf32>
    %92 = vector.broadcast %43 : vector<8x1xf32> to vector<8x256xf32>
    %93 = arith.mulf %91, %92 : vector<8x256xf32>
    %94 = vector.broadcast %44 : vector<8x1xf32> to vector<8x256xf32>
    %95 = arith.addf %93, %94 : vector<8x256xf32>
    %cst_27 = arith.constant 0.000000e+00 : f32
    %96 = vector.broadcast %cst_27 : f32 to vector<8x256xf32>
    %97 = arith.cmpf oge, %95, %96 : vector<8x256xf32>
    %cst_28 = arith.constant 2.000000e-01 : f32
    %98 = vector.broadcast %cst_28 : f32 to vector<8x256xf32>
    %99 = arith.mulf %98, %95 : vector<8x256xf32>
    %100 = arith.select %97, %95, %99 : vector<8x256xi1>, vector<8x256xf32>
    %c0_29 = arith.constant 0 : index
    %c0_30 = arith.constant 0 : index
    %c0_31 = arith.constant 0 : index
    %101 = vector.load %arg8[%c0_29, %c0_30, %c0_31] : memref<1x8x256xf32, #tpu.memory_space<vmem>>, vector<1x8x256xf32>
    %102 = vector.shape_cast %101 : vector<1x8x256xf32> to vector<8x256xf32>
    %103 = vector.shape_cast %100 : vector<8x256xf32> to vector<1x8x256xf32>
    tpu.vector_store %arg8[%c0_29, %c0_30, %c0_31], %103 {strides = array<i32>} : memref<1x8x256xf32, #tpu.memory_space<vmem>>, vector<1x8x256xf32>,
    return
  }
  func.func @transform_0(%arg0: i32) -> (i32, i32, i32) {
    %c0_i32 = arith.constant 0 : i32
    %c0_i32_0 = arith.constant 0 : i32
    %c0_i32_1 = arith.constant 0 : i32
    return %arg0, %c0_i32, %c0_i32_0 : i32, i32, i32
  }
  func.func @transform_1(%arg0: i32) -> (i32, i32) {
    %c0_i32 = arith.constant 0 : i32
    %c0_i32_0 = arith.constant 0 : i32
    %c0_i32_1 = arith.constant 0 : i32
    return %c0_i32, %c0_i32_0 : i32, i32
  }
  func.func @transform_2(%arg0: i32) -> (i32, i32) {
    %c0_i32 = arith.constant 0 : i32
    %c0_i32_0 = arith.constant 0 : i32
    %c0_i32_1 = arith.constant 0 : i32
    return %c0_i32, %c0_i32_0 : i32, i32
  }
  func.func @transform_3(%arg0: i32) -> (i32, i32) {
    %c0_i32 = arith.constant 0 : i32
    %c0_i32_0 = arith.constant 0 : i32
    %c0_i32_1 = arith.constant 0 : i32
    return %c0_i32, %c0_i32_0 : i32, i32
  }
  func.func @transform_4(%arg0: i32) -> (i32, i32) {
    %c0_i32 = arith.constant 0 : i32
    %c0_i32_0 = arith.constant 0 : i32
    %c0_i32_1 = arith.constant 0 : i32
    return %c0_i32, %c0_i32_0 : i32, i32
  }
  func.func @transform_5(%arg0: i32) -> (i32, i32) {
    %c0_i32 = arith.constant 0 : i32
    %c0_i32_0 = arith.constant 0 : i32
    %c0_i32_1 = arith.constant 0 : i32
    return %c0_i32, %c0_i32_0 : i32, i32
  }
  func.func @transform_6(%arg0: i32) -> (i32, i32) {
    %c0_i32 = arith.constant 0 : i32
    %c0_i32_0 = arith.constant 0 : i32
    %c0_i32_1 = arith.constant 0 : i32
    return %c0_i32, %c0_i32_0 : i32, i32
  }
  func.func @transform_7(%arg0: i32) -> (i32, i32, i32) {
    %c0_i32 = arith.constant 0 : i32
    %c0_i32_0 = arith.constant 0 : i32
    %c0_i32_1 = arith.constant 0 : i32
    return %arg0, %c0_i32, %c0_i32_0 : i32, i32, i32
  }
}

module attributes {stable_mosaic.version = 11 : i64} {
  func.func @_convsc_last_kernel(%arg0: i32, %arg1: memref<1x8x256xf32, #tpu.memory_space<vmem>>, %arg2: memref<1x8x256xf32, #tpu.memory_space<vmem>>, %arg3: memref<9x256xf32, #tpu.memory_space<vmem>>, %arg4: memref<8x72xf32, #tpu.memory_space<vmem>>, %arg5: memref<8x72xf32, #tpu.memory_space<vmem>>, %arg6: memref<8x1xf32, #tpu.memory_space<vmem>>, %arg7: memref<8x1xf32, #tpu.memory_space<vmem>>, %arg8: memref<8x1xf32, #tpu.memory_space<vmem>>, %arg9: memref<4x8xf32, #tpu.memory_space<vmem>>, %arg10: memref<4x1xf32, #tpu.memory_space<vmem>>, %arg11: memref<1x4x256xf32, #tpu.memory_space<vmem>>) attributes {dimension_semantics = [#tpu.dimension_semantics<parallel>], iteration_bounds = array<i64: 2>, scalar_prefetch = 0 : i64, scratch_operands = 0 : i64, tpu.core_type = #tpu.core_type<tc>, window_params = [{transform_indices = @transform_0, window_bounds = array<i64: 1, 8, 256>}, {transform_indices = @transform_1, window_bounds = array<i64: 1, 8, 256>}, {pipeline_mode = #tpu.pipeline_mode<synchronous>, transform_indices = @transform_2, window_bounds = array<i64: 9, 256>}, {pipeline_mode = #tpu.pipeline_mode<synchronous>, transform_indices = @transform_3, window_bounds = array<i64: 8, 72>}, {pipeline_mode = #tpu.pipeline_mode<synchronous>, transform_indices = @transform_4, window_bounds = array<i64: 8, 72>}, {pipeline_mode = #tpu.pipeline_mode<synchronous>, transform_indices = @transform_5, window_bounds = array<i64: 8, 1>}, {pipeline_mode = #tpu.pipeline_mode<synchronous>, transform_indices = @transform_6, window_bounds = array<i64: 8, 1>}, {pipeline_mode = #tpu.pipeline_mode<synchronous>, transform_indices = @transform_7, window_bounds = array<i64: 8, 1>}, {pipeline_mode = #tpu.pipeline_mode<synchronous>, transform_indices = @transform_8, window_bounds = array<i64: 4, 8>}, {pipeline_mode = #tpu.pipeline_mode<synchronous>, transform_indices = @transform_9, window_bounds = array<i64: 4, 1>}, {transform_indices = @transform_10, window_bounds = array<i64: 1, 4, 256>}]} {
    %c0 = arith.constant 0 : index
    %c0_0 = arith.constant 0 : index
    %c0_1 = arith.constant 0 : index
    %0 = vector.load %arg1[%c0, %c0_0, %c0_1] : memref<1x8x256xf32, #tpu.memory_space<vmem>>, vector<1x8x256xf32>
    %1 = vector.shape_cast %0 : vector<1x8x256xf32> to vector<8x256xf32>
    %c0_2 = arith.constant 0 : index
    %c0_3 = arith.constant 0 : index
    %2 = vector.load %arg4[%c0_2, %c0_3] : memref<8x72xf32, #tpu.memory_space<vmem>>, vector<8x72xf32>
    %c0_4 = arith.constant 0 : index
    %c0_5 = arith.constant 0 : index
    %3 = vector.load %arg3[%c0_4, %c0_5] : memref<9x256xf32, #tpu.memory_space<vmem>>, vector<9x256xf32>
    %c17_i32 = arith.constant 17 : i32
    %4 = tpu.dynamic_rotate %1 by %c17_i32 dim 1 : vector<8x256xf32>, i32 -> vector<8x256xf32>
    %5 = vector.extract_strided_slice %3 {offsets = [0, 0], sizes = [1, 256], strides = [1, 1]} : vector<9x256xf32> to vector<1x256xf32>
    %6 = vector.broadcast %5 : vector<1x256xf32> to vector<8x256xf32>
    %7 = arith.mulf %4, %6 : vector<8x256xf32>
    %c16_i32 = arith.constant 16 : i32
    %8 = tpu.dynamic_rotate %1 by %c16_i32 dim 1 : vector<8x256xf32>, i32 -> vector<8x256xf32>
    %9 = vector.extract_strided_slice %3 {offsets = [1, 0], sizes = [1, 256], strides = [1, 1]} : vector<9x256xf32> to vector<1x256xf32>
    %10 = vector.broadcast %9 : vector<1x256xf32> to vector<8x256xf32>
    %11 = arith.mulf %8, %10 : vector<8x256xf32>
    %c15_i32 = arith.constant 15 : i32
    %12 = tpu.dynamic_rotate %1 by %c15_i32 dim 1 : vector<8x256xf32>, i32 -> vector<8x256xf32>
    %13 = vector.extract_strided_slice %3 {offsets = [2, 0], sizes = [1, 256], strides = [1, 1]} : vector<9x256xf32> to vector<1x256xf32>
    %14 = vector.broadcast %13 : vector<1x256xf32> to vector<8x256xf32>
    %15 = arith.mulf %12, %14 : vector<8x256xf32>
    %c1_i32 = arith.constant 1 : i32
    %16 = tpu.dynamic_rotate %1 by %c1_i32 dim 1 : vector<8x256xf32>, i32 -> vector<8x256xf32>
    %17 = vector.extract_strided_slice %3 {offsets = [3, 0], sizes = [1, 256], strides = [1, 1]} : vector<9x256xf32> to vector<1x256xf32>
    %18 = vector.broadcast %17 : vector<1x256xf32> to vector<8x256xf32>
    %19 = arith.mulf %16, %18 : vector<8x256xf32>
    %c255_i32 = arith.constant 255 : i32
    %20 = tpu.dynamic_rotate %1 by %c255_i32 dim 1 : vector<8x256xf32>, i32 -> vector<8x256xf32>
    %21 = vector.extract_strided_slice %3 {offsets = [5, 0], sizes = [1, 256], strides = [1, 1]} : vector<9x256xf32> to vector<1x256xf32>
    %22 = vector.broadcast %21 : vector<1x256xf32> to vector<8x256xf32>
    %23 = arith.mulf %20, %22 : vector<8x256xf32>
    %c241_i32 = arith.constant 241 : i32
    %24 = tpu.dynamic_rotate %1 by %c241_i32 dim 1 : vector<8x256xf32>, i32 -> vector<8x256xf32>
    %25 = vector.extract_strided_slice %3 {offsets = [6, 0], sizes = [1, 256], strides = [1, 1]} : vector<9x256xf32> to vector<1x256xf32>
    %26 = vector.broadcast %25 : vector<1x256xf32> to vector<8x256xf32>
    %27 = arith.mulf %24, %26 : vector<8x256xf32>
    %c240_i32 = arith.constant 240 : i32
    %28 = tpu.dynamic_rotate %1 by %c240_i32 dim 1 : vector<8x256xf32>, i32 -> vector<8x256xf32>
    %29 = vector.extract_strided_slice %3 {offsets = [7, 0], sizes = [1, 256], strides = [1, 1]} : vector<9x256xf32> to vector<1x256xf32>
    %30 = vector.broadcast %29 : vector<1x256xf32> to vector<8x256xf32>
    %31 = arith.mulf %28, %30 : vector<8x256xf32>
    %c239_i32 = arith.constant 239 : i32
    %32 = tpu.dynamic_rotate %1 by %c239_i32 dim 1 : vector<8x256xf32>, i32 -> vector<8x256xf32>
    %33 = vector.extract_strided_slice %3 {offsets = [8, 0], sizes = [1, 256], strides = [1, 1]} : vector<9x256xf32> to vector<1x256xf32>
    %34 = vector.broadcast %33 : vector<1x256xf32> to vector<8x256xf32>
    %35 = arith.mulf %32, %34 : vector<8x256xf32>
    %36 = tpu.concatenate %7, %11, %15, %19, %1, %23, %27, %31, %35 in 0 : vector<8x256xf32>, vector<8x256xf32>, vector<8x256xf32>, vector<8x256xf32>, vector<8x256xf32>, vector<8x256xf32>, vector<8x256xf32>, vector<8x256xf32>, vector<8x256xf32> -> vector<72x256xf32>
    %cst = arith.constant dense<0.000000e+00> : vector<8x256xf32>
    %37 = tpu.matmul %2, %36, %cst {dimension_numbers = #tpu.dot_dimension_numbers<[1], [0], [0], [1], [0, 0, 1, 1], [], []>} : vector<8x72xf32>, vector<72x256xf32>, vector<8x256xf32> -> vector<8x256xf32>
    %c0_6 = arith.constant 0 : index
    %c0_7 = arith.constant 0 : index
    %c0_8 = arith.constant 0 : index
    %38 = vector.load %arg2[%c0_6, %c0_7, %c0_8] : memref<1x8x256xf32, #tpu.memory_space<vmem>>, vector<1x8x256xf32>
    %39 = vector.shape_cast %38 : vector<1x8x256xf32> to vector<8x256xf32>
    %c0_9 = arith.constant 0 : index
    %c0_10 = arith.constant 0 : index
    %40 = vector.load %arg5[%c0_9, %c0_10] : memref<8x72xf32, #tpu.memory_space<vmem>>, vector<8x72xf32>
    %c0_11 = arith.constant 0 : index
    %c0_12 = arith.constant 0 : index
    %41 = vector.load %arg3[%c0_11, %c0_12] : memref<9x256xf32, #tpu.memory_space<vmem>>, vector<9x256xf32>
    %c17_i32_13 = arith.constant 17 : i32
    %42 = tpu.dynamic_rotate %39 by %c17_i32_13 dim 1 : vector<8x256xf32>, i32 -> vector<8x256xf32>
    %43 = vector.extract_strided_slice %41 {offsets = [0, 0], sizes = [1, 256], strides = [1, 1]} : vector<9x256xf32> to vector<1x256xf32>
    %44 = vector.broadcast %43 : vector<1x256xf32> to vector<8x256xf32>
    %45 = arith.mulf %42, %44 : vector<8x256xf32>
    %c16_i32_14 = arith.constant 16 : i32
    %46 = tpu.dynamic_rotate %39 by %c16_i32_14 dim 1 : vector<8x256xf32>, i32 -> vector<8x256xf32>
    %47 = vector.extract_strided_slice %41 {offsets = [1, 0], sizes = [1, 256], strides = [1, 1]} : vector<9x256xf32> to vector<1x256xf32>
    %48 = vector.broadcast %47 : vector<1x256xf32> to vector<8x256xf32>
    %49 = arith.mulf %46, %48 : vector<8x256xf32>
    %c15_i32_15 = arith.constant 15 : i32
    %50 = tpu.dynamic_rotate %39 by %c15_i32_15 dim 1 : vector<8x256xf32>, i32 -> vector<8x256xf32>
    %51 = vector.extract_strided_slice %41 {offsets = [2, 0], sizes = [1, 256], strides = [1, 1]} : vector<9x256xf32> to vector<1x256xf32>
    %52 = vector.broadcast %51 : vector<1x256xf32> to vector<8x256xf32>
    %53 = arith.mulf %50, %52 : vector<8x256xf32>
    %c1_i32_16 = arith.constant 1 : i32
    %54 = tpu.dynamic_rotate %39 by %c1_i32_16 dim 1 : vector<8x256xf32>, i32 -> vector<8x256xf32>
    %55 = vector.extract_strided_slice %41 {offsets = [3, 0], sizes = [1, 256], strides = [1, 1]} : vector<9x256xf32> to vector<1x256xf32>
    %56 = vector.broadcast %55 : vector<1x256xf32> to vector<8x256xf32>
    %57 = arith.mulf %54, %56 : vector<8x256xf32>
    %c255_i32_17 = arith.constant 255 : i32
    %58 = tpu.dynamic_rotate %39 by %c255_i32_17 dim 1 : vector<8x256xf32>, i32 -> vector<8x256xf32>
    %59 = vector.extract_strided_slice %41 {offsets = [5, 0], sizes = [1, 256], strides = [1, 1]} : vector<9x256xf32> to vector<1x256xf32>
    %60 = vector.broadcast %59 : vector<1x256xf32> to vector<8x256xf32>
    %61 = arith.mulf %58, %60 : vector<8x256xf32>
    %c241_i32_18 = arith.constant 241 : i32
    %62 = tpu.dynamic_rotate %39 by %c241_i32_18 dim 1 : vector<8x256xf32>, i32 -> vector<8x256xf32>
    %63 = vector.extract_strided_slice %41 {offsets = [6, 0], sizes = [1, 256], strides = [1, 1]} : vector<9x256xf32> to vector<1x256xf32>
    %64 = vector.broadcast %63 : vector<1x256xf32> to vector<8x256xf32>
    %65 = arith.mulf %62, %64 : vector<8x256xf32>
    %c240_i32_19 = arith.constant 240 : i32
    %66 = tpu.dynamic_rotate %39 by %c240_i32_19 dim 1 : vector<8x256xf32>, i32 -> vector<8x256xf32>
    %67 = vector.extract_strided_slice %41 {offsets = [7, 0], sizes = [1, 256], strides = [1, 1]} : vector<9x256xf32> to vector<1x256xf32>
    %68 = vector.broadcast %67 : vector<1x256xf32> to vector<8x256xf32>
    %69 = arith.mulf %66, %68 : vector<8x256xf32>
    %c239_i32_20 = arith.constant 239 : i32
    %70 = tpu.dynamic_rotate %39 by %c239_i32_20 dim 1 : vector<8x256xf32>, i32 -> vector<8x256xf32>
    %71 = vector.extract_strided_slice %41 {offsets = [8, 0], sizes = [1, 256], strides = [1, 1]} : vector<9x256xf32> to vector<1x256xf32>
    %72 = vector.broadcast %71 : vector<1x256xf32> to vector<8x256xf32>
    %73 = arith.mulf %70, %72 : vector<8x256xf32>
    %74 = tpu.concatenate %45, %49, %53, %57, %39, %61, %65, %69, %73 in 0 : vector<8x256xf32>, vector<8x256xf32>, vector<8x256xf32>, vector<8x256xf32>, vector<8x256xf32>, vector<8x256xf32>, vector<8x256xf32>, vector<8x256xf32>, vector<8x256xf32> -> vector<72x256xf32>
    %cst_21 = arith.constant dense<0.000000e+00> : vector<8x256xf32>
    %75 = tpu.matmul %40, %74, %cst_21 {dimension_numbers = #tpu.dot_dimension_numbers<[1], [0], [0], [1], [0, 0, 1, 1], [], []>} : vector<8x72xf32>, vector<72x256xf32>, vector<8x256xf32> -> vector<8x256xf32>
    %76 = arith.addf %37, %75 : vector<8x256xf32>
    %c0_22 = arith.constant 0 : index
    %c0_23 = arith.constant 0 : index
    %77 = vector.load %arg6[%c0_22, %c0_23] : memref<8x1xf32, #tpu.memory_space<vmem>>, vector<8x1xf32>
    %78 = vector.broadcast %77 : vector<8x1xf32> to vector<8x256xf32>
    %79 = arith.addf %76, %78 : vector<8x256xf32>
    %c0_24 = arith.constant 0 : index
    %c0_25 = arith.constant 0 : index
    %80 = vector.load %arg7[%c0_24, %c0_25] : memref<8x1xf32, #tpu.memory_space<vmem>>, vector<8x1xf32>
    %c0_26 = arith.constant 0 : index
    %c0_27 = arith.constant 0 : index
    %81 = vector.load %arg8[%c0_26, %c0_27] : memref<8x1xf32, #tpu.memory_space<vmem>>, vector<8x1xf32>
    %82 = vector.extract_strided_slice %79 {offsets = [0, 0], sizes = [4, 256], strides = [1, 1]} : vector<8x256xf32> to vector<4x256xf32>
    %83 = vector.extract_strided_slice %79 {offsets = [4, 0], sizes = [4, 256], strides = [1, 1]} : vector<8x256xf32> to vector<4x256xf32>
    %84 = vector.shape_cast %82 : vector<4x256xf32> to vector<1x4x256xf32>
    %cst_28 = arith.constant dense<0.000000e+00> : vector<1xf32>
    %85 = vector.multi_reduction <add>, %84, %cst_28 [1, 2] : vector<1x4x256xf32> to vector<1xf32>
    %86 = vector.shape_cast %85 : vector<1xf32> to vector<1x1x1xf32>
    %87 = vector.extract %86[0, 0, 0] : f32 from vector<1x1x1xf32>
    %cst_29 = arith.constant 1.024000e+03 : f32
    %88 = arith.divf %87, %cst_29 : f32
    %89 = vector.shape_cast %83 : vector<4x256xf32> to vector<1x4x256xf32>
    %cst_30 = arith.constant dense<0.000000e+00> : vector<1xf32>
    %90 = vector.multi_reduction <add>, %89, %cst_30 [1, 2] : vector<1x4x256xf32> to vector<1xf32>
    %91 = vector.shape_cast %90 : vector<1xf32> to vector<1x1x1xf32>
    %92 = vector.extract %91[0, 0, 0] : f32 from vector<1x1x1xf32>
    %cst_31 = arith.constant 1.024000e+03 : f32
    %93 = arith.divf %92, %cst_31 : f32
    %94 = arith.mulf %82, %82 : vector<4x256xf32>
    %95 = vector.shape_cast %94 : vector<4x256xf32> to vector<1x4x256xf32>
    %cst_32 = arith.constant dense<0.000000e+00> : vector<1xf32>
    %96 = vector.multi_reduction <add>, %95, %cst_32 [1, 2] : vector<1x4x256xf32> to vector<1xf32>
    %97 = vector.shape_cast %96 : vector<1xf32> to vector<1x1x1xf32>
    %98 = vector.extract %97[0, 0, 0] : f32 from vector<1x1x1xf32>
    %cst_33 = arith.constant 1.024000e+03 : f32
    %99 = arith.divf %98, %cst_33 : f32
    %100 = arith.mulf %88, %88 : f32
    %101 = arith.subf %99, %100 : f32
    %cst_34 = arith.constant 0.000000e+00 : f32
    %102 = arith.maximumf %101, %cst_34 : f32
    %103 = arith.mulf %83, %83 : vector<4x256xf32>
    %104 = vector.shape_cast %103 : vector<4x256xf32> to vector<1x4x256xf32>
    %cst_35 = arith.constant dense<0.000000e+00> : vector<1xf32>
    %105 = vector.multi_reduction <add>, %104, %cst_35 [1, 2] : vector<1x4x256xf32> to vector<1xf32>
    %106 = vector.shape_cast %105 : vector<1xf32> to vector<1x1x1xf32>
    %107 = vector.extract %106[0, 0, 0] : f32 from vector<1x1x1xf32>
    %cst_36 = arith.constant 1.024000e+03 : f32
    %108 = arith.divf %107, %cst_36 : f32
    %109 = arith.mulf %93, %93 : f32
    %110 = arith.subf %108, %109 : f32
    %cst_37 = arith.constant 0.000000e+00 : f32
    %111 = arith.maximumf %110, %cst_37 : f32
    %112 = tpu.iota {dimensions = array<i32: 0>} : vector<8x1xi32>
    %c4_i32 = arith.constant 4 : i32
    %113 = vector.broadcast %c4_i32 : i32 to vector<8x1xi32>
    %114 = arith.cmpi slt, %112, %113 : vector<8x1xi32>
    %115 = vector.broadcast %88 : f32 to vector<8x1xf32>
    %116 = vector.broadcast %93 : f32 to vector<8x1xf32>
    %117 = arith.select %114, %115, %116 : vector<8x1xi1>, vector<8x1xf32>
    %cst_38 = arith.constant 9.99999974E-6 : f32
    %118 = arith.addf %102, %cst_38 : f32
    %119 = math.rsqrt %118 : f32
    %cst_39 = arith.constant 9.99999974E-6 : f32
    %120 = arith.addf %111, %cst_39 : f32
    %121 = math.rsqrt %120 : f32
    %122 = vector.broadcast %119 : f32 to vector<8x1xf32>
    %123 = vector.broadcast %121 : f32 to vector<8x1xf32>
    %124 = arith.select %114, %122, %123 : vector<8x1xi1>, vector<8x1xf32>
    %125 = vector.broadcast %117 : vector<8x1xf32> to vector<8x256xf32>
    %126 = arith.subf %79, %125 : vector<8x256xf32>
    %127 = vector.broadcast %124 : vector<8x1xf32> to vector<8x256xf32>
    %128 = arith.mulf %126, %127 : vector<8x256xf32>
    %129 = vector.broadcast %80 : vector<8x1xf32> to vector<8x256xf32>
    %130 = arith.mulf %128, %129 : vector<8x256xf32>
    %131 = vector.broadcast %81 : vector<8x1xf32> to vector<8x256xf32>
    %132 = arith.addf %130, %131 : vector<8x256xf32>
    %cst_40 = arith.constant 0.000000e+00 : f32
    %133 = vector.broadcast %cst_40 : f32 to vector<8x256xf32>
    %134 = arith.cmpf oge, %132, %133 : vector<8x256xf32>
    %cst_41 = arith.constant 2.000000e-01 : f32
    %135 = vector.broadcast %cst_41 : f32 to vector<8x256xf32>
    %136 = arith.mulf %135, %132 : vector<8x256xf32>
    %137 = arith.select %134, %132, %136 : vector<8x256xi1>, vector<8x256xf32>
    %c0_42 = arith.constant 0 : index
    %c0_43 = arith.constant 0 : index
    %138 = vector.load %arg9[%c0_42, %c0_43] : memref<4x8xf32, #tpu.memory_space<vmem>>, vector<4x8xf32>
    %cst_44 = arith.constant dense<0.000000e+00> : vector<4x256xf32>
    %139 = tpu.matmul %138, %137, %cst_44 {dimension_numbers = #tpu.dot_dimension_numbers<[1], [0], [0], [1], [0, 0, 1, 1], [], []>} : vector<4x8xf32>, vector<8x256xf32>, vector<4x256xf32> -> vector<4x256xf32>
    %c0_45 = arith.constant 0 : index
    %c0_46 = arith.constant 0 : index
    %140 = vector.load %arg10[%c0_45, %c0_46] : memref<4x1xf32, #tpu.memory_space<vmem>>, vector<4x1xf32>
    %141 = vector.broadcast %140 : vector<4x1xf32> to vector<4x256xf32>
    %142 = arith.addf %139, %141 : vector<4x256xf32>
    %c0_47 = arith.constant 0 : index
    %c0_48 = arith.constant 0 : index
    %c0_49 = arith.constant 0 : index
    %143 = vector.load %arg11[%c0_47, %c0_48, %c0_49] : memref<1x4x256xf32, #tpu.memory_space<vmem>>, vector<1x4x256xf32>
    %144 = vector.shape_cast %143 : vector<1x4x256xf32> to vector<4x256xf32>
    %145 = vector.shape_cast %142 : vector<4x256xf32> to vector<1x4x256xf32>
    tpu.vector_store %arg11[%c0_47, %c0_48, %c0_49], %145 {strides = array<i32>} : memref<1x4x256xf32, #tpu.memory_space<vmem>>, vector<1x4x256xf32>,
    return
  }
  func.func @transform_0(%arg0: i32) -> (i32, i32, i32) {
    %c0_i32 = arith.constant 0 : i32
    %c0_i32_0 = arith.constant 0 : i32
    %c0_i32_1 = arith.constant 0 : i32
    return %arg0, %c0_i32, %c0_i32_0 : i32, i32, i32
  }
  func.func @transform_1(%arg0: i32) -> (i32, i32, i32) {
    %c0_i32 = arith.constant 0 : i32
    %c0_i32_0 = arith.constant 0 : i32
    %c0_i32_1 = arith.constant 0 : i32
    return %arg0, %c0_i32, %c0_i32_0 : i32, i32, i32
  }
  func.func @transform_2(%arg0: i32) -> (i32, i32) {
    %c0_i32 = arith.constant 0 : i32
    %c0_i32_0 = arith.constant 0 : i32
    %c0_i32_1 = arith.constant 0 : i32
    return %c0_i32, %c0_i32_0 : i32, i32
  }
  func.func @transform_3(%arg0: i32) -> (i32, i32) {
    %c0_i32 = arith.constant 0 : i32
    %c0_i32_0 = arith.constant 0 : i32
    %c0_i32_1 = arith.constant 0 : i32
    return %c0_i32, %c0_i32_0 : i32, i32
  }
  func.func @transform_4(%arg0: i32) -> (i32, i32) {
    %c0_i32 = arith.constant 0 : i32
    %c0_i32_0 = arith.constant 0 : i32
    %c0_i32_1 = arith.constant 0 : i32
    return %c0_i32, %c0_i32_0 : i32, i32
  }
  func.func @transform_5(%arg0: i32) -> (i32, i32) {
    %c0_i32 = arith.constant 0 : i32
    %c0_i32_0 = arith.constant 0 : i32
    %c0_i32_1 = arith.constant 0 : i32
    return %c0_i32, %c0_i32_0 : i32, i32
  }
  func.func @transform_6(%arg0: i32) -> (i32, i32) {
    %c0_i32 = arith.constant 0 : i32
    %c0_i32_0 = arith.constant 0 : i32
    %c0_i32_1 = arith.constant 0 : i32
    return %c0_i32, %c0_i32_0 : i32, i32
  }
  func.func @transform_7(%arg0: i32) -> (i32, i32) {
    %c0_i32 = arith.constant 0 : i32
    %c0_i32_0 = arith.constant 0 : i32
    %c0_i32_1 = arith.constant 0 : i32
    return %c0_i32, %c0_i32_0 : i32, i32
  }
  func.func @transform_8(%arg0: i32) -> (i32, i32) {
    %c0_i32 = arith.constant 0 : i32
    %c0_i32_0 = arith.constant 0 : i32
    %c0_i32_1 = arith.constant 0 : i32
    return %c0_i32, %c0_i32_0 : i32, i32
  }
  func.func @transform_9(%arg0: i32) -> (i32, i32) {
    %c0_i32 = arith.constant 0 : i32
    %c0_i32_0 = arith.constant 0 : i32
    %c0_i32_1 = arith.constant 0 : i32
    return %c0_i32, %c0_i32_0 : i32, i32
  }
  func.func @transform_10(%arg0: i32) -> (i32, i32, i32) {
    %c0_i32 = arith.constant 0 : i32
    %c0_i32_0 = arith.constant 0 : i32
    %c0_i32_1 = arith.constant 0 : i32
    return %arg0, %c0_i32, %c0_i32_0 : i32, i32, i32
  }
}

</mosaic_0001>

<llo_original>
// kernel: _lambda_.2
$region0: #{_lambda_.2}
  #allocation0 [shape = 'u32[]', space=smem, size = 0x4, offset = 0x4, fixed_abs, tag = 'smem constant byte address 0x4 - core index']
  #allocation1 [shape = 'u32[144,128]{1,0:T(1,128)}', space=vmem, size = 0x12000, scoped, tag = 'internal scratch']
  %s0 = inlined_call_operand.vmem [shape: f32[2,8,64], index: 0, kind: input, shape index: {}]
  %s1 = inlined_call_operand.vmem [shape: f32[64,256], index: 1, kind: input, shape index: {}]
  %s2 = inlined_call_operand.vmem [shape: f32[9,256], index: 2, kind: input, shape index: {}]
  %s3 = inlined_call_operand.hbm [shape: f32[8,72], index: 3, kind: input, shape index: {}]
  %s4 = inlined_call_operand.hbm [shape: f32[8,1], index: 4, kind: input, shape index: {}]
  %s5 = inlined_call_operand.hbm [shape: f32[8,1], index: 5, kind: input, shape index: {}]
  %s6 = inlined_call_operand.vmem [shape: f32[8,1], index: 6, kind: input, shape index: {}]
  %s7 = inlined_call_operand.vmem [shape: f32[2,8,256], index: 7, kind: output, shape index: {}]
  %s8 = sld [smem:[#allocation0]]
  $region73: #{_lambda_.2} parent=0
    _
  %s10 = ssub.s32 1, %s8
  %s11 = scalar_select 0, %s10, %s8
  $region1: #{_lambda_.2} parent=0
    #allocation2 [shape = 'u8[4096]{0}', space=vmem, size = 0x1000, scoped, tag = 'input window, operand 3, single buffered']
    #allocation3 [shape = 's32[2]{0}', space=sflag, size = 0x8, scoped, tag = 'scoped memory for _lambda_.2']
    #allocation4 [shape = 'u8[4096]{0}', space=vmem, size = 0x1000, scoped, tag = 'input window, operand 4, single buffered']
    #allocation5 [shape = 's32[1]{0}', space=sflag, size = 0x4, scoped, tag = 'scoped memory for _lambda_.2']
    #allocation6 [shape = 'u8[4096]{0}', space=vmem, size = 0x1000, scoped, tag = 'input window, operand 5, single buffered']
    %12 = vsyncpa [#allocation3], 0
    %13 = vsyncpa [#allocation5], 0
    loop: start=0, step=1, limit=4
    $region2: #{_lambda_.2} parent=1 // loop_pre_header
      _
    $region3: #{_lambda_.2} parent=1 // loop_header
      %s15 = sphi 0, %s19
      %p16 = scmp.ge.s32.totalorder %s15, 4
      %s25 = sphi 0, %s27
      %s28 = sphi 0, %s25
      %s29 = sphi 0, %s28
      %s45 = sphi 0, %s29
      %s49 = sphi 0, %s49
      %s51 = sphi 0, %s49
      %s52 = sphi 0, %s51
      %s66 = sphi 0, %s52
      %s70 = sphi 0, %s70
      %s72 = sphi 0, %s70
      %s73 = sphi 0, %s72
      %s87 = sphi 0, %s73
      %s91 = sphi 0, %s91
      %s93 = sphi 0, %s91
      %s94 = sphi 0, %s93
      %s108 = sphi 0, %s94
      %s112 = sphi 0, %s112
      %s114 = sphi 0, %s112
      %s115 = sphi 0, %s114
      %s129 = sphi 0, %s115
      %s133 = sphi 0, %s133
      %s135 = sphi 0, %s133
      %s136 = sphi 0, %s135
      %s150 = sphi 0, %s136
      %s154 = sphi 0, %s154
      %s156 = sphi 0, %s154
      %s157 = sphi 0, %s156
      %s171 = sphi 0, %s157
      %s177 = sphi 0, %s179
      %s180 = sphi 0, %s177
      %s181 = sphi 0, %s180
      %s197 = sphi 0, %s181
    $region4: #{_lambda_.2} parent=1 // loop_header_branch
      %18 = sbr.rel (%p16) target = $region8
    $region5: #{_lambda_.2} parent=1 // loop_body
      %s20 = ssub.s32 %s15, 1
      %s21 = ssub.s32 %s15, 2
      %s22 = sadd.s32 %s15, 1
      %s23 = ssub.s32 %s15, %s22
      %p24 = scmp.eq.s32.totalorder %s23, 0
      %s26 = sadd.s32 %s25, 1
      %s27 = scalar_select %p24, %s25, %s26
      %p30 = pneg %p24
      %p31 = scmp.eq.s32.totalorder %s15, 1
      %p32 = por %p30, %p31
      %p33 = scmp.ne.s32.totalorder %s25, %s28
      %p34 = scmp.eq.s32.totalorder %s15, 0
      %p35 = por %p33, %p34
      %p36 = scmp.ne.s32.totalorder %s25, %s28
      %p37 = scmp.eq.s32.totalorder %s20, 1
      %p38 = por %p36, %p37
      %p39 = scmp.ne.s32.totalorder %s28, %s29
      %p40 = scmp.eq.s32.totalorder %s20, 0
      %p41 = por %p39, %p40
      %p42 = scmp.ne.s32.totalorder %s28, %s29
      %p43 = scmp.eq.s32.totalorder %s21, 1
      %p44 = por %p42, %p43
      %p46 = scmp.ne.s32.totalorder %s29, %s45
      %p47 = scmp.eq.s32.totalorder %s21, 0
      %p48 = por %p46, %p47
      %s50 = sadd.s32 %s49, 1
      %p53 = scmp.eq.s32.totalorder %s15, 1
      %p54 = scmp.ne.s32.totalorder %s49, %s51
      %p55 = scmp.eq.s32.totalorder %s15, 0
      %p56 = por %p54, %p55
      %p57 = scmp.ne.s32.totalorder %s49, %s51
      %p58 = scmp.eq.s32.totalorder %s20, 1
      %p59 = por %p57, %p58
      %p60 = scmp.ne.s32.totalorder %s51, %s52
      %p61 = scmp.eq.s32.totalorder %s20, 0
      %p62 = por %p60, %p61
      %p63 = scmp.ne.s32.totalorder %s51, %s52
      %p64 = scmp.eq.s32.totalorder %s21, 1
      %p65 = por %p63, %p64
      %p67 = scmp.ne.s32.totalorder %s52, %s66
      %p68 = scmp.eq.s32.totalorder %s21, 0
      %p69 = por %p67, %p68
      %s71 = sadd.s32 %s70, 1
      %p74 = scmp.eq.s32.totalorder %s15, 1
      %p75 = scmp.ne.s32.totalorder %s70, %s72
      %p76 = scmp.eq.s32.totalorder %s15, 0
      %p77 = por %p75, %p76
      %p78 = scmp.ne.s32.totalorder %s70, %s72
      %p79 = scmp.eq.s32.totalorder %s20, 1
      %p80 = por %p78, %p79
      %p81 = scmp.ne.s32.totalorder %s72, %s73
      %p82 = scmp.eq.s32.totalorder %s20, 0
      %p83 = por %p81, %p82
      %p84 = scmp.ne.s32.totalorder %s72, %s73
      %p85 = scmp.eq.s32.totalorder %s21, 1
      %p86 = por %p84, %p85
      %p88 = scmp.ne.s32.totalorder %s73, %s87
      %p89 = scmp.eq.s32.totalorder %s21, 0
      %p90 = por %p88, %p89
      %s92 = sadd.s32 %s91, 1
      %p95 = scmp.eq.s32.totalorder %s15, 1
      %p96 = scmp.ne.s32.totalorder %s91, %s93
      %p97 = scmp.eq.s32.totalorder %s15, 0
      %p98 = por %p96, %p97
      %p99 = scmp.ne.s32.totalorder %s91, %s93
      %p100 = scmp.eq.s32.totalorder %s20, 1
      %p101 = por %p99, %p100
      %p102 = scmp.ne.s32.totalorder %s93, %s94
      %p103 = scmp.eq.s32.totalorder %s20, 0
      %p104 = por %p102, %p103
      %p105 = scmp.ne.s32.totalorder %s93, %s94
      %p106 = scmp.eq.s32.totalorder %s21, 1
      %p107 = por %p105, %p106
      %p109 = scmp.ne.s32.totalorder %s94, %s108
      %p110 = scmp.eq.s32.totalorder %s21, 0
      %p111 = por %p109, %p110
      %s113 = sadd.s32 %s112, 1
      %p116 = scmp.eq.s32.totalorder %s15, 1
      %p117 = scmp.ne.s32.totalorder %s112, %s114
      %p118 = scmp.eq.s32.totalorder %s15, 0
      %p119 = por %p117, %p118
      %p120 = scmp.ne.s32.totalorder %s112, %s114
      %p121 = scmp.eq.s32.totalorder %s20, 1
      %p122 = por %p120, %p121
      %p123 = scmp.ne.s32.totalorder %s114, %s115
      %p124 = scmp.eq.s32.totalorder %s20, 0
      %p125 = por %p123, %p124
      %p126 = scmp.ne.s32.totalorder %s114, %s115
      %p127 = scmp.eq.s32.totalorder %s21, 1
      %p128 = por %p126, %p127
      %p130 = scmp.ne.s32.totalorder %s115, %s129
      %p131 = scmp.eq.s32.totalorder %s21, 0
      %p132 = por %p130, %p131
      %s134 = sadd.s32 %s133, 1
      %p137 = scmp.eq.s32.totalorder %s15, 1
      %p138 = scmp.ne.s32.totalorder %s133, %s135
      %p139 = scmp.eq.s32.totalorder %s15, 0
      %p140 = por %p138, %p139
      %p141 = scmp.ne.s32.totalorder %s133, %s135
      %p142 = scmp.eq.s32.totalorder %s20, 1
      %p143 = por %p141, %p142
      %p144 = scmp.ne.s32.totalorder %s135, %s136
      %p145 = scmp.eq.s32.totalorder %s20, 0
      %p146 = por %p144, %p145
      %p147 = scmp.ne.s32.totalorder %s135, %s136
      %p148 = scmp.eq.s32.totalorder %s21, 1
      %p149 = por %p147, %p148
      %p151 = scmp.ne.s32.totalorder %s136, %s150
      %p152 = scmp.eq.s32.totalorder %s21, 0
      %p153 = por %p151, %p152
      %s155 = sadd.s32 %s154, 1
      %p158 = scmp.eq.s32.totalorder %s15, 1
      %p159 = scmp.ne.s32.totalorder %s154, %s156
      %p160 = scmp.eq.s32.totalorder %s15, 0
      %p161 = por %p159, %p160
      %p162 = scmp.ne.s32.totalorder %s154, %s156
      %p163 = scmp.eq.s32.totalorder %s20, 1
      %p164 = por %p162, %p163
      %p165 = scmp.ne.s32.totalorder %s156, %s157
      %p166 = scmp.eq.s32.totalorder %s20, 0
      %p167 = por %p165, %p166
      %p168 = scmp.ne.s32.totalorder %s156, %s157
      %p169 = scmp.eq.s32.totalorder %s21, 1
      %p170 = por %p168, %p169
      %p172 = scmp.ne.s32.totalorder %s157, %s171
      %p173 = scmp.eq.s32.totalorder %s21, 0
      %p174 = por %p172, %p173
      %s175 = ssub.s32 %s15, %s22
      %p176 = scmp.eq.s32.totalorder %s175, 0
      %s178 = sadd.s32 %s177, 1
      %s179 = scalar_select %p176, %s177, %s178
      %p182 = pneg %p176
      %p183 = scmp.eq.s32.totalorder %s15, 1
      %p184 = por %p182, %p183
      %p185 = scmp.ne.s32.totalorder %s177, %s180
      %p186 = scmp.eq.s32.totalorder %s15, 0
      %p187 = por %p185, %p186
      %p188 = scmp.ne.s32.totalorder %s177, %s180
      %p189 = scmp.eq.s32.totalorder %s20, 1
      %p190 = por %p188, %p189
      %p191 = scmp.ne.s32.totalorder %s180, %s181
      %p192 = scmp.eq.s32.totalorder %s20, 0
      %p193 = por %p191, %p192
      %p194 = scmp.ne.s32.totalorder %s180, %s181
      %p195 = scmp.eq.s32.totalorder %s21, 1
      %p196 = por %p194, %p195
      %p198 = scmp.ne.s32.totalorder %s181, %s197
      %p199 = scmp.eq.s32.totalorder %s21, 0
      %p200 = por %p198, %p199
      %p201 = scmp.le.s32.totalorder 1, %s15
      %p202 = scmp.lt.s32.totalorder %s15, 3
      %p203 = pnand %p201, %p202
      %p204 = pneg %p203
      // Predicated region
      $region9: #{_lambda_.2} parent=5 // pred_check
        _
      $region10: #{_lambda_.2} parent=5 // pred_check_branch
        %206 = sbr.rel (%p203) target = $region12
      $region11: #{_lambda_.2} parent=5 // pred_region
        %s207 = ssub.s32 %s15, 1
        // Predicated region
        $region13: #{_lambda_.2} parent=11 // pred_check
          %p208 = pneg %p62
        $region14: #{_lambda_.2} parent=11 // pred_check_branch
          %210 = sbr.rel (%p208) target = $region16
        $region15: #{_lambda_.2} parent=11 // pred_region
          _
        $region16: #{_lambda_.2} parent=11 // pred_fallthru
          _
        // Predicated region
        $region17: #{_lambda_.2} parent=11 // pred_check
          %p211 = pneg %p83
        $region18: #{_lambda_.2} parent=11 // pred_check_branch
          %213 = sbr.rel (%p211) target = $region20
        $region19: #{_lambda_.2} parent=11 // pred_region
          _
        $region20: #{_lambda_.2} parent=11 // pred_fallthru
          _
        // Predicated region
        $region21: #{_lambda_.2} parent=11 // pred_check
          %p214 = pneg %p104
        $region22: #{_lambda_.2} parent=11 // pred_check_branch
          %216 = sbr.rel (%p214) target = $region24
        $region23: #{_lambda_.2} parent=11 // pred_region
          %s218 = ssub.s32 128, 128
          %219 = vsyncadd [#allocation3], %s218
          %s221 = sshll.u32 [#allocation2], 4
          %s222 = int_to_ptr.vmem [resolvable:$true] %s221
          %224 = dma.hbm_to_vmem [thread:$0]  %s3, 128, %s222, [#allocation3]
        $region24: #{_lambda_.2} parent=11 // pred_fallthru
          _
        // Predicated region
        $region25: #{_lambda_.2} parent=11 // pred_check
          %p225 = pneg %p125
        $region26: #{_lambda_.2} parent=11 // pred_check_branch
          %227 = sbr.rel (%p225) target = $region28
        $region27: #{_lambda_.2} parent=11 // pred_region
          %s229 = ssub.s32 128, 128
          %230 = vsyncadd [#allocation5], %s229
          %s232 = sshll.u32 [#allocation4], 4
          %s233 = int_to_ptr.vmem [resolvable:$true] %s232
          %235 = dma.hbm_to_vmem [thread:$0]  %s4, 128, %s233, [#allocation5]
        $region28: #{_lambda_.2} parent=11 // pred_fallthru
          _
        // Predicated region
        $region29: #{_lambda_.2} parent=11 // pred_check
          %p236 = pneg %p146
        $region30: #{_lambda_.2} parent=11 // pred_check_branch
          %238 = sbr.rel (%p236) target = $region32
        $region31: #{_lambda_.2} parent=11 // pred_region
          %s240 = ssub.s32 128, 128
          %241 = vsyncadd [#allocation5], %s240
          %s243 = sshll.u32 [#allocation6], 4
          %s244 = int_to_ptr.vmem [resolvable:$true] %s243
          %246 = dma.hbm_to_vmem [thread:$0]  %s5, 128, %s244, [#allocation5]
        $region32: #{_lambda_.2} parent=11 // pred_fallthru
          _
        // Predicated region
        $region33: #{_lambda_.2} parent=11 // pred_check
          %p247 = pneg %p167
        $region34: #{_lambda_.2} parent=11 // pred_check_branch
          %249 = sbr.rel (%p247) target = $region36
        $region35: #{_lambda_.2} parent=11 // pred_region
          _
        $region36: #{_lambda_.2} parent=11 // pred_fallthru
          _
      $region12: #{_lambda_.2} parent=5 // pred_fallthru
        _
      %p250 = scmp.lt.s32.totalorder %s15, 2
      // Predicated region
      $region37: #{_lambda_.2} parent=5 // pred_check
        %p251 = pneg %p250
      $region38: #{_lambda_.2} parent=5 // pred_check_branch
        %253 = sbr.rel (%p251) target = $region40
      $region39: #{_lambda_.2} parent=5 // pred_region
        // Predicated region
        $region41: #{_lambda_.2} parent=39 // pred_check
          %p254 = pneg %p35
        $region42: #{_lambda_.2} parent=39 // pred_check_branch
          %256 = sbr.rel (%p254) target = $region44
        $region43: #{_lambda_.2} parent=39 // pred_region
          %p257 = scmp.lt.s32.totalorder %s15, 1
          %s258 = scalar_select %p257, %s15, 1
          %s259 = smul.addr %s258, 8
          %s260 = scalar_lea.vmem %s0, %s259
        $region44: #{_lambda_.2} parent=39 // pred_fallthru
          _
      $region40: #{_lambda_.2} parent=5 // pred_fallthru
        _
      %p261 = scmp.le.s32.totalorder 1, %s15
      %p262 = scmp.lt.s32.totalorder %s15, 3
      %p263 = pnand %p261, %p262
      %p264 = pneg %p263
      // Predicated region
      $region45: #{_lambda_.2} parent=5 // pred_check
        _
      $region46: #{_lambda_.2} parent=5 // pred_check_branch
        %266 = sbr.rel (%p263) target = $region48
      $region47: #{_lambda_.2} parent=5 // pred_region
        %s267 = ssub.s32 %s15, 1
        // Predicated region
        $region49: #{_lambda_.2} parent=47 // pred_check
          %p268 = pneg %p104
        $region50: #{_lambda_.2} parent=47 // pred_check_branch
          %270 = sbr.rel (%p268) target = $region52
        $region51: #{_lambda_.2} parent=47 // pred_region
          %271 = dma.done [#allocation3], 128
        $region52: #{_lambda_.2} parent=47 // pred_fallthru
          _
        // Predicated region
        $region53: #{_lambda_.2} parent=47 // pred_check
          %p272 = pneg %p125
        $region54: #{_lambda_.2} parent=47 // pred_check_branch
          %274 = sbr.rel (%p272) target = $region56
        $region55: #{_lambda_.2} parent=47 // pred_region
          %275 = dma.done [#allocation5], 128
        $region56: #{_lambda_.2} parent=47 // pred_fallthru
          _
        // Predicated region
        $region57: #{_lambda_.2} parent=47 // pred_check
          %p276 = pneg %p146
        $region58: #{_lambda_.2} parent=47 // pred_check_branch
          %278 = sbr.rel (%p276) target = $region60
        $region59: #{_lambda_.2} parent=47 // pred_region
          %279 = dma.done [#allocation5], 128
        $region60: #{_lambda_.2} parent=47 // pred_fallthru
          _
        %p280 = scmp.lt.s32.totalorder %s20, 1
        %s281 = scalar_select %p280, %s20, 1
        %s282 = smul.addr %s281, 8
        %s283 = scalar_lea.vmem %s0, %s282
        %p284 = pneg %p41
        %p285 = pneg %p38
        %p286 = pneg %p62
        %p287 = pneg %p59
        %p288 = pneg %p83
        %p289 = pneg %p80
        %p290 = pneg %p104
        %p291 = pneg %p101
        %p292 = pneg %p125
        %p293 = pneg %p122
        %p294 = pneg %p146
        %p295 = pneg %p143
        %p296 = pneg %p167
        %p297 = pneg %p164
        %p298 = pneg %p193
        %p299 = pneg %p190
        %p300 = scmp.lt.s32.totalorder %s20, 1
        %s301 = scalar_select %p300, %s20, 1
        %s302 = smul.addr %s301, 2
        %s303 = smul.addr %s302, 8
        %s304 = scalar_lea.vmem %s7, %s303
        %p305 = scmp.lt.s32.totalorder %s20, 1
        %s306 = scalar_select %p305, %s20, 1
        %s307 = smul.addr %s306, 8
        %s308 = scalar_lea.vmem %s0, %s307
        %p309 = scmp.lt.s32.totalorder %s20, 1
        %s310 = scalar_select %p309, %s20, 1
        %s311 = smul.addr %s310, 2
        %s312 = smul.addr %s311, 8
        %s313 = scalar_lea.vmem %s7, %s312
        %v314 = vld [vmem:[%s308] sm:$0xff]
        %v315 = vld [vmem:[%s1] sm:$0xff]
        %v316 = vld [vmem:[%s1 + $0x8] sm:$0xff]
        %v317 = vld [vmem:[%s1 + $0x10] sm:$0xff]
        %v318 = vld [vmem:[%s1 + $0x18] sm:$0xff]
        %v319 = vld [vmem:[%s1 + $0x20] sm:$0xff]
        %v320 = vld [vmem:[%s1 + $0x28] sm:$0xff]
        %v321 = vld [vmem:[%s1 + $0x30] sm:$0xff]
        %v322 = vld [vmem:[%s1 + $0x38] sm:$0xff]
        %v323 = vld [vmem:[%s1 + $0x40] sm:$0xff]
        %v324 = vld [vmem:[%s1 + $0x48] sm:$0xff]
        %v325 = vld [vmem:[%s1 + $0x50] sm:$0xff]
        %v326 = vld [vmem:[%s1 + $0x58] sm:$0xff]
        %v327 = vld [vmem:[%s1 + $0x60] sm:$0xff]
        %v328 = vld [vmem:[%s1 + $0x68] sm:$0xff]
        %v329 = vld [vmem:[%s1 + $0x70] sm:$0xff]
        %v330 = vld [vmem:[%s1 + $0x78] sm:$0xff]
        %vm331 = vcmask 523264
        %v333 = vsel %vm331, %v314, 0
        %335 = vmatprep.subr.mxu0 %v316
        %336 = vmatpush1.msra.mxu0 %v315
        %337 = vmatprep.subr.mxu0 %v318
        %338 = vmatpush1.msra.mxu0 %v317
        %339 = vmatprep.subr.mxu0 %v320
        %340 = vmatpush1.msra.mxu0 %v319
        %341 = vmatprep.subr.mxu0 %v322
        %342 = vmatpush1.msra.mxu0 %v321
        %343 = vmatprep.subr.mxu0 %v324
        %344 = vmatpush1.msra.mxu0 %v323
        %345 = vmatprep.subr.mxu0 %v326
        %346 = vmatpush1.msra.mxu0 %v325
        %347 = vmatprep.subr.mxu0 %v328
        %348 = vmatpush1.msra.mxu0 %v327
        %349 = vmatprep.subr.mxu0 %v330
        %350 = vmatpush1.msra.mxu0 %v329
        %351 = vmatprep.subr.mxu0 0.0
        %352 = vmatpush1.msra.mxu0 0.0
        %353 = vmatprep.subr.mxu0 0.0
        %354 = vmatpush1.msra.mxu0 0.0
        %355 = vmatprep.subr.mxu0 0.0
        %356 = vmatpush1.msra.mxu0 0.0
        %357 = vmatprep.subr.mxu0 0.0
        %358 = vmatpush1.msra.mxu0 0.0
        %359 = vmatprep.subr.mxu0 0.0
        %360 = vmatpush1.msra.mxu0 0.0
        %361 = vmatprep.subr.mxu0 0.0
        %362 = vmatpush1.msra.mxu0 0.0
        %363 = vmatprep.subr.mxu0 0.0
        %364 = vmatpush1.msra.mxu0 0.0
        %365 = vmatprep.subr.mxu0 0.0
        %366 = vmatpush1.msra.mxu0 0.0
        %367 = vmatprep.subr.mxu0 0.0
        %368 = vmatpush1.msra.mxu0 0.0
        %369 = vmatprep.subr.mxu0 0.0
        %370 = vmatpush1.msra.mxu0 0.0
        %371 = vmatprep.subr.mxu0 0.0
        %372 = vmatpush1.msra.mxu0 0.0
        %373 = vmatprep.subr.mxu0 0.0
        %374 = vmatpush1.msra.mxu0 0.0
        %375 = vmatprep.subr.mxu0 0.0
        %376 = vmatpush1.msra.mxu0 0.0
        %377 = vmatprep.subr.mxu0 0.0
        %378 = vmatpush1.msra.mxu0 0.0
        %379 = vmatprep.subr.mxu0 0.0
        %380 = vmatpush1.msra.mxu0 0.0
        %381 = vmatprep.subr.mxu0 0.0
        %382 = vmatpush1.msra.mxu0 0.0
        %383 = vmatprep.subr.mxu0 0.0
        %384 = vmatpush1.msra.mxu0 0.0
        %385 = vmatprep.subr.mxu0 0.0
        %386 = vmatpush1.msra.mxu0 0.0
        %387 = vmatprep.subr.mxu0 0.0
        %388 = vmatpush1.msra.mxu0 0.0
        %389 = vmatprep.subr.mxu0 0.0
        %390 = vmatpush1.msra.mxu0 0.0
        %391 = vmatprep.subr.mxu0 0.0
        %392 = vmatpush1.msra.mxu0 0.0
        %393 = vmatprep.subr.mxu0 0.0
        %394 = vmatpush1.msra.mxu0 0.0
        %395 = vmatprep.subr.mxu0 0.0
        %396 = vmatpush1.msra.mxu0 0.0
        %397 = vmatprep.subr.mxu0 0.0
        %398 = vmatpush1.msra.mxu0 0.0
        %399 = vmatprep.mubr.f32.mxu0 0.0
        %400 = vmatmul.mubr.f32.gmra.mrb[0].mxu0 %v333
        %v401 = vpop.f32.mrb[0].mxu0
        %v402 = vadd.f32 0.0, %v401
        %v403 = vpop.f32.mrb[0].mxu0
        %v404 = vadd.f32 0.0, %v403
        %405 = vdwg.mxu0
        %v406 = vld [vmem:[#allocation2] sm:$0xff]
        %v407 = vld [vmem:[%s2] sm:$0xff]
        %v408 = vld [vmem:[%s2 + $0x8] sm:$0xff]
        %v409 = vld [vmem:[%s2 + $0x10] sm:$0x1]
        %v410 = vld [vmem:[%s2 + $0x18] sm:$0x1]
        %411 = vrot.lane.b32.xlu0 %v402, 17
        %v412 = vpop.permute.xlu0 %411
        %413 = vrot.lane.b32.xlu0 %v404, 17
        %v414 = vpop.permute.xlu0 %413
        %v415 = vlaneseq
        %v416 = vand.u32 %v415, 127
        %vm417 = vcmp.lt.s32.totalorder %v416, 17
        %v418 = vsel %vm417, %v412, %v414
        %v419 = vsel %vm417, %v414, %v412
        %v420 = vlaneseq
        %v421 = vshrl.u32 %v420, 7
        %v422 = vsub.s32 0, %v421
        %v423 = vrot.slane %v407, %v422
        %v424 = vlaneseq
        %v425 = vshrl.u32 %v424, 7
        %v426 = vsub.s32 0, %v425
        %v427 = vrot.slane %v408, %v426
        %v428 = vmul.f32 %v419, %v423
        %v429 = vmul.f32 %v418, %v427
        %430 = vrot.lane.b32.xlu0 %v402, 16
        %v431 = vpop.permute.xlu0 %430
        %432 = vrot.lane.b32.xlu0 %v404, 16
        %v433 = vpop.permute.xlu0 %432
        %vm434 = vcmp.lt.s32.totalorder %v416, 16
        %v435 = vsel %vm434, %v431, %v433
        %v436 = vsel %vm434, %v433, %v431
        %v437 = vlaneseq
        %v438 = vshrl.u32 %v437, 7
        %v439 = vsub.s32 1, %v438
        %v440 = vrot.slane %v407, %v439
        %v441 = vlaneseq
        %v442 = vshrl.u32 %v441, 7
        %v443 = vsub.s32 1, %v442
        %v444 = vrot.slane %v408, %v443
        %v445 = vmul.f32 %v436, %v440
        %v446 = vmul.f32 %v435, %v444
        %447 = vrot.lane.b32.xlu0 %v402, 15
        %v448 = vpop.permute.xlu0 %447
        %449 = vrot.lane.b32.xlu0 %v404, 15
        %v450 = vpop.permute.xlu0 %449
        %vm451 = vcmp.lt.s32.totalorder %v416, 15
        %v452 = vsel %vm451, %v448, %v450
        %v453 = vsel %vm451, %v450, %v448
        %v454 = vlaneseq
        %v455 = vshrl.u32 %v454, 7
        %v456 = vsub.s32 2, %v455
        %v457 = vrot.slane %v407, %v456
        %v458 = vlaneseq
        %v459 = vshrl.u32 %v458, 7
        %v460 = vsub.s32 2, %v459
        %v461 = vrot.slane %v408, %v460
        %v462 = vmul.f32 %v453, %v457
        %v463 = vmul.f32 %v452, %v461
        %464 = vrot.lane.b32.xlu0 %v402, 1
        %v465 = vpop.permute.xlu0 %464
        %466 = vrot.lane.b32.xlu0 %v404, 1
        %v467 = vpop.permute.xlu0 %466
        %vm468 = vcmp.lt.s32.totalorder %v416, 1
        %v469 = vsel %vm468, %v465, %v467
        %v470 = vsel %vm468, %v467, %v465
        %v471 = vlaneseq
        %v472 = vshrl.u32 %v471, 7
        %v473 = vsub.s32 3, %v472
        %v474 = vrot.slane %v407, %v473
        %v475 = vlaneseq
        %v476 = vshrl.u32 %v475, 7
        %v477 = vsub.s32 3, %v476
        %v478 = vrot.slane %v408, %v477
        %v479 = vmul.f32 %v470, %v474
        %v480 = vmul.f32 %v469, %v478
        %481 = vrot.lane.b32.xlu0 %v402, 127
        %v482 = vpop.permute.xlu0 %481
        %483 = vrot.lane.b32.xlu0 %v404, 127
        %v484 = vpop.permute.xlu0 %483
        %vm485 = vcmp.lt.s32.totalorder %v416, 127
        %v486 = vsel %vm485, %v482, %v484
        %v487 = vsel %vm485, %v484, %v482
        %v488 = vlaneseq
        %v489 = vshrl.u32 %v488, 7
        %v490 = vsub.s32 5, %v489
        %v491 = vrot.slane %v407, %v490
        %v492 = vlaneseq
        %v493 = vshrl.u32 %v492, 7
        %v494 = vsub.s32 5, %v493
        %v495 = vrot.slane %v408, %v494
        %v496 = vmul.f32 %v486, %v491
        %v497 = vmul.f32 %v487, %v495
        %498 = vrot.lane.b32.xlu0 %v402, 113
        %v499 = vpop.permute.xlu0 %498
        %500 = vrot.lane.b32.xlu0 %v404, 113
        %v501 = vpop.permute.xlu0 %500
        %vm502 = vcmp.lt.s32.totalorder %v416, 113
        %v503 = vsel %vm502, %v499, %v501
        %v504 = vsel %vm502, %v501, %v499
        %v505 = vlaneseq
        %v506 = vshrl.u32 %v505, 7
        %v507 = vsub.s32 6, %v506
        %v508 = vrot.slane %v407, %v507
        %v509 = vlaneseq
        %v510 = vshrl.u32 %v509, 7
        %v511 = vsub.s32 6, %v510
        %v512 = vrot.slane %v408, %v511
        %v513 = vmul.f32 %v503, %v508
        %v514 = vmul.f32 %v504, %v512
        %515 = vrot.lane.b32.xlu0 %v402, 112
        %v516 = vpop.permute.xlu0 %515
        %517 = vrot.lane.b32.xlu0 %v404, 112
        %v518 = vpop.permute.xlu0 %517
        %vm519 = vcmp.lt.s32.totalorder %v416, 112
        %v520 = vsel %vm519, %v516, %v518
        %v521 = vsel %vm519, %v518, %v516
        %v522 = vlaneseq
        %v523 = vshrl.u32 %v522, 7
        %v524 = vsub.s32 7, %v523
        %v525 = vrot.slane %v407, %v524
        %v526 = vlaneseq
        %v527 = vshrl.u32 %v526, 7
        %v528 = vsub.s32 7, %v527
        %v529 = vrot.slane %v408, %v528
        %v530 = vmul.f32 %v520, %v525
        %v531 = vmul.f32 %v521, %v529
        %532 = vrot.lane.b32.xlu0 %v402, 111
        %v533 = vpop.permute.xlu0 %532
        %534 = vrot.lane.b32.xlu0 %v404, 111
        %v535 = vpop.permute.xlu0 %534
        %vm536 = vcmp.lt.s32.totalorder %v416, 111
        %v537 = vsel %vm536, %v533, %v535
        %v538 = vsel %vm536, %v535, %v533
        %v539 = vlaneseq
        %v540 = vshrl.u32 %v539, 7
        %v541 = vsub.s32 0, %v540
        %v542 = vrot.slane %v409, %v541
        %v543 = vlaneseq
        %v544 = vshrl.u32 %v543, 7
        %v545 = vsub.s32 0, %v544
        %v546 = vrot.slane %v410, %v545
        %v547 = vmul.f32 %v537, %v542
        %v548 = vmul.f32 %v538, %v546
        %v549 = vld [vmem:[#allocation4] sm:$0xff]
        %551 = vset.pattern.permute.xlu0 0
        %552 = vperm.xlu0 %551, %v549
        %v553 = vpop.permute.xlu0 %552
        %vm555 = vcmask 588800
        %v557 = vsel %vm555, %v406, 0
        %559 = vmatprep.subr.mxu0 %v429
        %560 = vmatpush1.msra.mxu0 %v428
        %561 = vmatprep.subr.mxu0 %v446
        %562 = vmatpush1.msra.mxu0 %v445
        %563 = vmatprep.subr.mxu0 %v463
        %564 = vmatpush1.msra.mxu0 %v462
        %565 = vmatprep.subr.mxu0 %v480
        %566 = vmatpush1.msra.mxu0 %v479
        %567 = vmatprep.subr.mxu0 %v404
        %568 = vmatpush1.msra.mxu0 %v402
        %569 = vmatprep.subr.mxu0 %v497
        %570 = vmatpush1.msra.mxu0 %v496
        %571 = vmatprep.subr.mxu0 %v514
        %572 = vmatpush1.msra.mxu0 %v513
        %573 = vmatprep.subr.mxu0 %v531
        %574 = vmatpush1.msra.mxu0 %v530
        %575 = vmatprep.subr.mxu0 %v548
        %576 = vmatpush1.msra.mxu0 %v547
        %577 = vmatprep.subr.mxu0 0.0
        %578 = vmatpush1.msra.mxu0 0.0
        %579 = vmatprep.subr.mxu0 0.0
        %580 = vmatpush1.msra.mxu0 0.0
        %581 = vmatprep.subr.mxu0 0.0
        %582 = vmatpush1.msra.mxu0 0.0
        %583 = vmatprep.subr.mxu0 0.0
        %584 = vmatpush1.msra.mxu0 0.0
        %585 = vmatprep.subr.mxu0 0.0
        %586 = vmatpush1.msra.mxu0 0.0
        %587 = vmatprep.subr.mxu0 0.0
        %588 = vmatpush1.msra.mxu0 0.0
        %589 = vmatprep.subr.mxu0 0.0
        %590 = vmatpush1.msra.mxu0 0.0
        %591 = vmatprep.subr.mxu0 0.0
        %592 = vmatpush1.msra.mxu0 0.0
        %593 = vmatprep.subr.mxu0 0.0
        %594 = vmatpush1.msra.mxu0 0.0
        %595 = vmatprep.subr.mxu0 0.0
        %596 = vmatpush1.msra.mxu0 0.0
        %597 = vmatprep.subr.mxu0 0.0
        %598 = vmatpush1.msra.mxu0 0.0
        %599 = vmatprep.subr.mxu0 0.0
        %600 = vmatpush1.msra.mxu0 0.0
        %601 = vmatprep.subr.mxu0 0.0
        %602 = vmatpush1.msra.mxu0 0.0
        %603 = vmatprep.subr.mxu0 0.0
        %604 = vmatpush1.msra.mxu0 0.0
        %605 = vmatprep.subr.mxu0 0.0
        %606 = vmatpush1.msra.mxu0 0.0
        %607 = vmatprep.subr.mxu0 0.0
        %608 = vmatpush1.msra.mxu0 0.0
        %609 = vmatprep.subr.mxu0 0.0
        %610 = vmatpush1.msra.mxu0 0.0
        %611 = vmatprep.subr.mxu0 0.0
        %612 = vmatpush1.msra.mxu0 0.0
        %613 = vmatprep.subr.mxu0 0.0
        %614 = vmatpush1.msra.mxu0 0.0
        %615 = vmatprep.subr.mxu0 0.0
        %616 = vmatpush1.msra.mxu0 0.0
        %617 = vmatprep.subr.mxu0 0.0
        %618 = vmatpush1.msra.mxu0 0.0
        %619 = vmatprep.subr.mxu0 0.0
        %620 = vmatpush1.msra.mxu0 0.0
        %621 = vmatprep.subr.mxu0 0.0
        %622 = vmatpush1.msra.mxu0 0.0
        %623 = vmatprep.mubr.f32.mxu0 0.0
        %624 = vmatmul.mubr.f32.gmra.mrb[0].mxu0 %v557
        %v625 = vpop.f32.mrb[0].mxu0
        %v626 = vadd.f32 %v553, %v625
        %v627 = vpop.f32.mrb[0].mxu0
        %v628 = vadd.f32 %v553, %v627
        %629 = vdwg.mxu0
        %v630 = vld [vmem:[#allocation6] sm:$0xff]
        %v631 = vld [vmem:[%s6] sm:$0xff]
        %vm632 = vcmask 1043456
        %v633 = vsel %vm632, %v626, 0.0
        %v634 = vsel %vm632, %v628, 0.0
        %v635 = vadd.f32 %v633, %v634
        %636 = vadd.xlane.f32.xlu0 %v635
        %v637 = vpop.xlane.xlu0 %636
        %v638 = vrot.slane %v637, 4
        %v639 = vadd.f32 %v637, %v638
        %v640 = vrot.slane %v639, 2
        %v641 = vadd.f32 %v639, %v640
        %v642 = vrot.slane %v641, 1
        %v643 = vadd.f32 %v641, %v642
        %s644 = vtos %v643
        %v645 = vrcp.pop 1024.0
        %s646 = vtos %v645
        %s647 = smul.f32 %s644, %s646
        %v650 = vrot.slane %v626, 4
        %v651 = vrot.slane %v628, 4
        %v654 = vsel %vm632, %v650, 0.0
        %v655 = vsel %vm632, %v651, 0.0
        %v656 = vadd.f32 %v654, %v655
        %657 = vadd.xlane.f32.xlu0 %v656
        %v658 = vpop.xlane.xlu0 %657
        %v659 = vrot.slane %v658, 4
        %v660 = vadd.f32 %v658, %v659
        %v661 = vrot.slane %v660, 2
        %v662 = vadd.f32 %v660, %v661
        %v663 = vrot.slane %v662, 1
        %v664 = vadd.f32 %v662, %v663
        %s665 = vtos %v664
        %v666 = vrcp.pop 1024.0
        %s667 = vtos %v666
        %s668 = smul.f32 %s665, %s667
        %v669 = vmul.f32 %v626, %v626
        %v670 = vmul.f32 %v628, %v628
        %v671 = vsel %vm632, %v669, 0.0
        %v672 = vsel %vm632, %v670, 0.0
        %v673 = vadd.f32 %v671, %v672
        %674 = vadd.xlane.f32.xlu0 %v673
        %v675 = vpop.xlane.xlu0 %674
        %v676 = vrot.slane %v675, 4
        %v677 = vadd.f32 %v675, %v676
        %v678 = vrot.slane %v677, 2
        %v679 = vadd.f32 %v677, %v678
        %v680 = vrot.slane %v679, 1
        %v681 = vadd.f32 %v679, %v680
        %s682 = vtos %v681
        %v683 = vrcp.pop 1024.0
        %s684 = vtos %v683
        %s685 = smul.f32 %s682, %s684
        %s686 = smul.f32 %s647, %s647
        %s687 = ssub.f32 %s685, %s686
        %s688 = smax.f32 %s687, 0.0
        %v691 = vrot.slane %v669, 4
        %v692 = vrot.slane %v670, 4
        %v695 = vsel %vm632, %v691, 0.0
        %v696 = vsel %vm632, %v692, 0.0
        %v697 = vadd.f32 %v695, %v696
        %698 = vadd.xlane.f32.xlu0 %v697
        %v699 = vpop.xlane.xlu0 %698
        %v700 = vrot.slane %v699, 4
        %v701 = vadd.f32 %v699, %v700
        %v702 = vrot.slane %v701, 2
        %v703 = vadd.f32 %v701, %v702
        %v704 = vrot.slane %v703, 1
        %v705 = vadd.f32 %v703, %v704
        %s706 = vtos %v705
        %v707 = vrcp.pop 1024.0
        %s708 = vtos %v707
        %s709 = smul.f32 %s706, %s708
        %s710 = smul.f32 %s668, %s668
        %s711 = ssub.f32 %s709, %s710
        %s712 = smax.f32 %s711, 0.0
        %v713 = vlaneseq
        %v714 = vshrl.u32 %v713, 7
        %vm715 = vcmp.lt.s32.totalorder %v714, 4
        %v716 = vstv %s647
        %v717 = vstv %s668
        %v718 = vsel %vm715, %v716, %v717
        %s719 = sadd.f32 %s688, 1e-05
        %v720 = vstv %s719
        %v721 = vrsqrt.pop %v720
        %s722 = vtos %v721
        %s723 = sadd.f32 %s712, 1e-05
        %v724 = vstv %s723
        %v725 = vrsqrt.pop %v724
        %s726 = vtos %v725
        %v727 = vstv %s722
        %v728 = vstv %s726
        %v729 = vsel %vm715, %v727, %v728
        %v730 = vsub.f32 %v626, %v718
        %v731 = vsub.f32 %v628, %v718
        %v732 = vmul.f32 %v730, %v729
        %v733 = vmul.f32 %v731, %v729
        %735 = vset.pattern.permute.xlu0 0
        %736 = vperm.xlu0 %735, %v630
        %v737 = vpop.permute.xlu0 %736
        %v739 = vmul.f32 %v732, %v737
        %v740 = vmul.f32 %v733, %v737
        %742 = vset.pattern.permute.xlu0 0
        %743 = vperm.xlu0 %742, %v631
        %v744 = vpop.permute.xlu0 %743
        %v746 = vadd.f32 %v739, %v744
        %v747 = vadd.f32 %v740, %v744
        %vm748 = vcmp.ge.f32.partialorder %v746, 0.0
        %vm749 = vcmp.ge.f32.partialorder %v747, 0.0
        %v750 = vmul.f32 %v746, 0.2
        %v751 = vmul.f32 %v747, 0.2
        %v752 = vsel %vm748, %v746, %v750
        %v753 = vsel %vm749, %v747, %v751
        %754 = vst [vmem:[%s313] sm:$0xff] %v752
        %755 = vst [vmem:[%s313 + $0x8] sm:$0xff] %v753
        %p756 = scmp.lt.s32.totalorder %s20, 1
        %s757 = scalar_select %p756, %s20, 1
        %s758 = smul.addr %s757, 2
        %s759 = smul.addr %s758, 8
        %s760 = scalar_lea.vmem %s7, %s759
        // Predicated region
        $region61: #{_lambda_.2} parent=47 // pred_check
          %p761 = pneg %p190
        $region62: #{_lambda_.2} parent=47 // pred_check_branch
          %763 = sbr.rel (%p761) target = $region64
        $region63: #{_lambda_.2} parent=47 // pred_region
          _
        $region64: #{_lambda_.2} parent=47 // pred_fallthru
          _
      $region48: #{_lambda_.2} parent=5 // pred_fallthru
        _
      %p764 = scmp.le.s32.totalorder 2, %s15
      // Predicated region
      $region65: #{_lambda_.2} parent=5 // pred_check
        %p765 = pneg %p764
      $region66: #{_lambda_.2} parent=5 // pred_check_branch
        %767 = sbr.rel (%p765) target = $region68
      $region67: #{_lambda_.2} parent=5 // pred_region
        %s768 = ssub.s32 %s15, 2
        // Predicated region
        $region69: #{_lambda_.2} parent=67 // pred_check
          %p769 = pneg %p196
        $region70: #{_lambda_.2} parent=67 // pred_check_branch
          %771 = sbr.rel (%p769) target = $region72
        $region71: #{_lambda_.2} parent=67 // pred_region
          %p772 = scmp.lt.s32.totalorder %s21, 1
          %s773 = scalar_select %p772, %s21, 1
          %s774 = smul.addr %s773, 2
          %s775 = smul.addr %s774, 8
          %s776 = scalar_lea.vmem %s7, %s775
        $region72: #{_lambda_.2} parent=67 // pred_fallthru
          _
      $region68: #{_lambda_.2} parent=5 // pred_fallthru
        _
    $region6: #{_lambda_.2} parent=1 // loop_footer
      %s19 = sadd.s32 1, %s15
    $region7: #{_lambda_.2} parent=1 // loop_footer_branch
      %14 = sbr.rel target = $region3
    $region8: #{_lambda_.2} parent=1 // loop_exit
      _
    %777 = vsyncpa [#allocation3], 1
    %s778 = scalar_lea.sflag [#allocation3], 1
    %779 = vsyncpa %s778, 1
    %780 = vsyncpa [#allocation5], 1

// kernel: _lambda_.3
$region0: #{_lambda_.3}
  #allocation0 [shape = 'u32[]', space=smem, size = 0x4, offset = 0x4, fixed_abs, tag = 'smem constant byte address 0x4 - core index']
  #allocation1 [shape = 'u32[144,128]{1,0:T(1,128)}', space=vmem, size = 0x12000, scoped, tag = 'internal scratch']
  %s0 = inlined_call_operand.vmem [shape: f32[2,8,256], index: 0, kind: input, shape index: {}]
  %s1 = inlined_call_operand.vmem [shape: f32[2,8,256], index: 1, kind: input, shape index: {}]
  %s2 = inlined_call_operand.vmem [shape: f32[9,256], index: 2, kind: input, shape index: {}]
  %s3 = inlined_call_operand.vmem [shape: f32[8,72], index: 3, kind: input, shape index: {}]
  %s4 = inlined_call_operand.vmem [shape: f32[8,72], index: 4, kind: input, shape index: {}]
  %s5 = inlined_call_operand.vmem [shape: f32[8,1], index: 5, kind: input, shape index: {}]
  %s6 = inlined_call_operand.vmem [shape: f32[8,1], index: 6, kind: input, shape index: {}]
  %s7 = inlined_call_operand.vmem [shape: f32[8,1], index: 7, kind: input, shape index: {}]
  %s8 = inlined_call_operand.vmem [shape: f32[4,8], index: 8, kind: input, shape index: {}]
  %s9 = inlined_call_operand.vmem [shape: f32[4,1], index: 9, kind: input, shape index: {}]
  %s10 = inlined_call_operand.vmem [shape: f32[2,4,256], index: 10, kind: output, shape index: {}]
  %s11 = sld [smem:[#allocation0]]
  $region73: #{_lambda_.3} parent=0
    _
  %s13 = ssub.s32 1, %s11
  %s14 = scalar_select 0, %s13, %s11
  loop: start=0, step=1, limit=4
  $region2: #{_lambda_.3} parent=0 // loop_pre_header
    _
  $region3: #{_lambda_.3} parent=0 // loop_header
    %s16 = sphi 0, %s20
    %p17 = scmp.ge.s32.totalorder %s16, 4
    %s26 = sphi 0, %s28
    %s29 = sphi 0, %s26
    %s30 = sphi 0, %s29
    %s46 = sphi 0, %s30
    %s52 = sphi 0, %s54
    %s55 = sphi 0, %s52
    %s56 = sphi 0, %s55
    %s72 = sphi 0, %s56
    %s76 = sphi 0, %s76
    %s78 = sphi 0, %s76
    %s79 = sphi 0, %s78
    %s93 = sphi 0, %s79
    %s97 = sphi 0, %s97
    %s99 = sphi 0, %s97
    %s100 = sphi 0, %s99
    %s114 = sphi 0, %s100
    %s118 = sphi 0, %s118
    %s120 = sphi 0, %s118
    %s121 = sphi 0, %s120
    %s135 = sphi 0, %s121
    %s139 = sphi 0, %s139
    %s141 = sphi 0, %s139
    %s142 = sphi 0, %s141
    %s156 = sphi 0, %s142
    %s160 = sphi 0, %s160
    %s162 = sphi 0, %s160
    %s163 = sphi 0, %s162
    %s177 = sphi 0, %s163
    %s181 = sphi 0, %s181
    %s183 = sphi 0, %s181
    %s184 = sphi 0, %s183
    %s198 = sphi 0, %s184
    %s202 = sphi 0, %s202
    %s204 = sphi 0, %s202
    %s205 = sphi 0, %s204
    %s219 = sphi 0, %s205
    %s223 = sphi 0, %s223
    %s225 = sphi 0, %s223
    %s226 = sphi 0, %s225
    %s240 = sphi 0, %s226
    %s246 = sphi 0, %s248
    %s249 = sphi 0, %s246
    %s250 = sphi 0, %s249
    %s266 = sphi 0, %s250
  $region4: #{_lambda_.3} parent=0 // loop_header_branch
    %19 = sbr.rel (%p17) target = $region8
  $region5: #{_lambda_.3} parent=0 // loop_body
    %s21 = ssub.s32 %s16, 1
    %s22 = ssub.s32 %s16, 2
    %s23 = sadd.s32 %s16, 1
    %s24 = ssub.s32 %s16, %s23
    %p25 = scmp.eq.s32.totalorder %s24, 0
    %s27 = sadd.s32 %s26, 1
    %s28 = scalar_select %p25, %s26, %s27
    %p31 = pneg %p25
    %p32 = scmp.eq.s32.totalorder %s16, 1
    %p33 = por %p31, %p32
    %p34 = scmp.ne.s32.totalorder %s26, %s29
    %p35 = scmp.eq.s32.totalorder %s16, 0
    %p36 = por %p34, %p35
    %p37 = scmp.ne.s32.totalorder %s26, %s29
    %p38 = scmp.eq.s32.totalorder %s21, 1
    %p39 = por %p37, %p38
    %p40 = scmp.ne.s32.totalorder %s29, %s30
    %p41 = scmp.eq.s32.totalorder %s21, 0
    %p42 = por %p40, %p41
    %p43 = scmp.ne.s32.totalorder %s29, %s30
    %p44 = scmp.eq.s32.totalorder %s22, 1
    %p45 = por %p43, %p44
    %p47 = scmp.ne.s32.totalorder %s30, %s46
    %p48 = scmp.eq.s32.totalorder %s22, 0
    %p49 = por %p47, %p48
    %s50 = ssub.s32 %s16, %s23
    %p51 = scmp.eq.s32.totalorder %s50, 0
    %s53 = sadd.s32 %s52, 1
    %s54 = scalar_select %p51, %s52, %s53
    %p57 = pneg %p51
    %p58 = scmp.eq.s32.totalorder %s16, 1
    %p59 = por %p57, %p58
    %p60 = scmp.ne.s32.totalorder %s52, %s55
    %p61 = scmp.eq.s32.totalorder %s16, 0
    %p62 = por %p60, %p61
    %p63 = scmp.ne.s32.totalorder %s52, %s55
    %p64 = scmp.eq.s32.totalorder %s21, 1
    %p65 = por %p63, %p64
    %p66 = scmp.ne.s32.totalorder %s55, %s56
    %p67 = scmp.eq.s32.totalorder %s21, 0
    %p68 = por %p66, %p67
    %p69 = scmp.ne.s32.totalorder %s55, %s56
    %p70 = scmp.eq.s32.totalorder %s22, 1
    %p71 = por %p69, %p70
    %p73 = scmp.ne.s32.totalorder %s56, %s72
    %p74 = scmp.eq.s32.totalorder %s22, 0
    %p75 = por %p73, %p74
    %s77 = sadd.s32 %s76, 1
    %p80 = scmp.eq.s32.totalorder %s16, 1
    %p81 = scmp.ne.s32.totalorder %s76, %s78
    %p82 = scmp.eq.s32.totalorder %s16, 0
    %p83 = por %p81, %p82
    %p84 = scmp.ne.s32.totalorder %s76, %s78
    %p85 = scmp.eq.s32.totalorder %s21, 1
    %p86 = por %p84, %p85
    %p87 = scmp.ne.s32.totalorder %s78, %s79
    %p88 = scmp.eq.s32.totalorder %s21, 0
    %p89 = por %p87, %p88
    %p90 = scmp.ne.s32.totalorder %s78, %s79
    %p91 = scmp.eq.s32.totalorder %s22, 1
    %p92 = por %p90, %p91
    %p94 = scmp.ne.s32.totalorder %s79, %s93
    %p95 = scmp.eq.s32.totalorder %s22, 0
    %p96 = por %p94, %p95
    %s98 = sadd.s32 %s97, 1
    %p101 = scmp.eq.s32.totalorder %s16, 1
    %p102 = scmp.ne.s32.totalorder %s97, %s99
    %p103 = scmp.eq.s32.totalorder %s16, 0
    %p104 = por %p102, %p103
    %p105 = scmp.ne.s32.totalorder %s97, %s99
    %p106 = scmp.eq.s32.totalorder %s21, 1
    %p107 = por %p105, %p106
    %p108 = scmp.ne.s32.totalorder %s99, %s100
    %p109 = scmp.eq.s32.totalorder %s21, 0
    %p110 = por %p108, %p109
    %p111 = scmp.ne.s32.totalorder %s99, %s100
    %p112 = scmp.eq.s32.totalorder %s22, 1
    %p113 = por %p111, %p112
    %p115 = scmp.ne.s32.totalorder %s100, %s114
    %p116 = scmp.eq.s32.totalorder %s22, 0
    %p117 = por %p115, %p116
    %s119 = sadd.s32 %s118, 1
    %p122 = scmp.eq.s32.totalorder %s16, 1
    %p123 = scmp.ne.s32.totalorder %s118, %s120
    %p124 = scmp.eq.s32.totalorder %s16, 0
    %p125 = por %p123, %p124
    %p126 = scmp.ne.s32.totalorder %s118, %s120
    %p127 = scmp.eq.s32.totalorder %s21, 1
    %p128 = por %p126, %p127
    %p129 = scmp.ne.s32.totalorder %s120, %s121
    %p130 = scmp.eq.s32.totalorder %s21, 0
    %p131 = por %p129, %p130
    %p132 = scmp.ne.s32.totalorder %s120, %s121
    %p133 = scmp.eq.s32.totalorder %s22, 1
    %p134 = por %p132, %p133
    %p136 = scmp.ne.s32.totalorder %s121, %s135
    %p137 = scmp.eq.s32.totalorder %s22, 0
    %p138 = por %p136, %p137
    %s140 = sadd.s32 %s139, 1
    %p143 = scmp.eq.s32.totalorder %s16, 1
    %p144 = scmp.ne.s32.totalorder %s139, %s141
    %p145 = scmp.eq.s32.totalorder %s16, 0
    %p146 = por %p144, %p145
    %p147 = scmp.ne.s32.totalorder %s139, %s141
    %p148 = scmp.eq.s32.totalorder %s21, 1
    %p149 = por %p147, %p148
    %p150 = scmp.ne.s32.totalorder %s141, %s142
    %p151 = scmp.eq.s32.totalorder %s21, 0
    %p152 = por %p150, %p151
    %p153 = scmp.ne.s32.totalorder %s141, %s142
    %p154 = scmp.eq.s32.totalorder %s22, 1
    %p155 = por %p153, %p154
    %p157 = scmp.ne.s32.totalorder %s142, %s156
    %p158 = scmp.eq.s32.totalorder %s22, 0
    %p159 = por %p157, %p158
    %s161 = sadd.s32 %s160, 1
    %p164 = scmp.eq.s32.totalorder %s16, 1
    %p165 = scmp.ne.s32.totalorder %s160, %s162
    %p166 = scmp.eq.s32.totalorder %s16, 0
    %p167 = por %p165, %p166
    %p168 = scmp.ne.s32.totalorder %s160, %s162
    %p169 = scmp.eq.s32.totalorder %s21, 1
    %p170 = por %p168, %p169
    %p171 = scmp.ne.s32.totalorder %s162, %s163
    %p172 = scmp.eq.s32.totalorder %s21, 0
    %p173 = por %p171, %p172
    %p174 = scmp.ne.s32.totalorder %s162, %s163
    %p175 = scmp.eq.s32.totalorder %s22, 1
    %p176 = por %p174, %p175
    %p178 = scmp.ne.s32.totalorder %s163, %s177
    %p179 = scmp.eq.s32.totalorder %s22, 0
    %p180 = por %p178, %p179
    %s182 = sadd.s32 %s181, 1
    %p185 = scmp.eq.s32.totalorder %s16, 1
    %p186 = scmp.ne.s32.totalorder %s181, %s183
    %p187 = scmp.eq.s32.totalorder %s16, 0
    %p188 = por %p186, %p187
    %p189 = scmp.ne.s32.totalorder %s181, %s183
    %p190 = scmp.eq.s32.totalorder %s21, 1
    %p191 = por %p189, %p190
    %p192 = scmp.ne.s32.totalorder %s183, %s184
    %p193 = scmp.eq.s32.totalorder %s21, 0
    %p194 = por %p192, %p193
    %p195 = scmp.ne.s32.totalorder %s183, %s184
    %p196 = scmp.eq.s32.totalorder %s22, 1
    %p197 = por %p195, %p196
    %p199 = scmp.ne.s32.totalorder %s184, %s198
    %p200 = scmp.eq.s32.totalorder %s22, 0
    %p201 = por %p199, %p200
    %s203 = sadd.s32 %s202, 1
    %p206 = scmp.eq.s32.totalorder %s16, 1
    %p207 = scmp.ne.s32.totalorder %s202, %s204
    %p208 = scmp.eq.s32.totalorder %s16, 0
    %p209 = por %p207, %p208
    %p210 = scmp.ne.s32.totalorder %s202, %s204
    %p211 = scmp.eq.s32.totalorder %s21, 1
    %p212 = por %p210, %p211
    %p213 = scmp.ne.s32.totalorder %s204, %s205
    %p214 = scmp.eq.s32.totalorder %s21, 0
    %p215 = por %p213, %p214
    %p216 = scmp.ne.s32.totalorder %s204, %s205
    %p217 = scmp.eq.s32.totalorder %s22, 1
    %p218 = por %p216, %p217
    %p220 = scmp.ne.s32.totalorder %s205, %s219
    %p221 = scmp.eq.s32.totalorder %s22, 0
    %p222 = por %p220, %p221
    %s224 = sadd.s32 %s223, 1
    %p227 = scmp.eq.s32.totalorder %s16, 1
    %p228 = scmp.ne.s32.totalorder %s223, %s225
    %p229 = scmp.eq.s32.totalorder %s16, 0
    %p230 = por %p228, %p229
    %p231 = scmp.ne.s32.totalorder %s223, %s225
    %p232 = scmp.eq.s32.totalorder %s21, 1
    %p233 = por %p231, %p232
    %p234 = scmp.ne.s32.totalorder %s225, %s226
    %p235 = scmp.eq.s32.totalorder %s21, 0
    %p236 = por %p234, %p235
    %p237 = scmp.ne.s32.totalorder %s225, %s226
    %p238 = scmp.eq.s32.totalorder %s22, 1
    %p239 = por %p237, %p238
    %p241 = scmp.ne.s32.totalorder %s226, %s240
    %p242 = scmp.eq.s32.totalorder %s22, 0
    %p243 = por %p241, %p242
    %s244 = ssub.s32 %s16, %s23
    %p245 = scmp.eq.s32.totalorder %s244, 0
    %s247 = sadd.s32 %s246, 1
    %s248 = scalar_select %p245, %s246, %s247
    %p251 = pneg %p245
    %p252 = scmp.eq.s32.totalorder %s16, 1
    %p253 = por %p251, %p252
    %p254 = scmp.ne.s32.totalorder %s246, %s249
    %p255 = scmp.eq.s32.totalorder %s16, 0
    %p256 = por %p254, %p255
    %p257 = scmp.ne.s32.totalorder %s246, %s249
    %p258 = scmp.eq.s32.totalorder %s21, 1
    %p259 = por %p257, %p258
    %p260 = scmp.ne.s32.totalorder %s249, %s250
    %p261 = scmp.eq.s32.totalorder %s21, 0
    %p262 = por %p260, %p261
    %p263 = scmp.ne.s32.totalorder %s249, %s250
    %p264 = scmp.eq.s32.totalorder %s22, 1
    %p265 = por %p263, %p264
    %p267 = scmp.ne.s32.totalorder %s250, %s266
    %p268 = scmp.eq.s32.totalorder %s22, 0
    %p269 = por %p267, %p268
    %p270 = scmp.le.s32.totalorder 1, %s16
    %p271 = scmp.lt.s32.totalorder %s16, 3
    %p272 = pnand %p270, %p271
    %p273 = pneg %p272
    // Predicated region
    $region9: #{_lambda_.3} parent=5 // pred_check
      _
    $region10: #{_lambda_.3} parent=5 // pred_check_branch
      %275 = sbr.rel (%p272) target = $region12
    $region11: #{_lambda_.3} parent=5 // pred_region
      %s276 = ssub.s32 %s16, 1
      // Predicated region
      $region13: #{_lambda_.3} parent=11 // pred_check
        %p277 = pneg %p89
      $region14: #{_lambda_.3} parent=11 // pred_check_branch
        %279 = sbr.rel (%p277) target = $region16
      $region15: #{_lambda_.3} parent=11 // pred_region
        _
      $region16: #{_lambda_.3} parent=11 // pred_fallthru
        _
      // Predicated region
      $region17: #{_lambda_.3} parent=11 // pred_check
        %p280 = pneg %p110
      $region18: #{_lambda_.3} parent=11 // pred_check_branch
        %282 = sbr.rel (%p280) target = $region20
      $region19: #{_lambda_.3} parent=11 // pred_region
        _
      $region20: #{_lambda_.3} parent=11 // pred_fallthru
        _
      // Predicated region
      $region21: #{_lambda_.3} parent=11 // pred_check
        %p283 = pneg %p131
      $region22: #{_lambda_.3} parent=11 // pred_check_branch
        %285 = sbr.rel (%p283) target = $region24
      $region23: #{_lambda_.3} parent=11 // pred_region
        _
      $region24: #{_lambda_.3} parent=11 // pred_fallthru
        _
      // Predicated region
      $region25: #{_lambda_.3} parent=11 // pred_check
        %p286 = pneg %p152
      $region26: #{_lambda_.3} parent=11 // pred_check_branch
        %288 = sbr.rel (%p286) target = $region28
      $region27: #{_lambda_.3} parent=11 // pred_region
        _
      $region28: #{_lambda_.3} parent=11 // pred_fallthru
        _
      // Predicated region
      $region29: #{_lambda_.3} parent=11 // pred_check
        %p289 = pneg %p173
      $region30: #{_lambda_.3} parent=11 // pred_check_branch
        %291 = sbr.rel (%p289) target = $region32
      $region31: #{_lambda_.3} parent=11 // pred_region
        _
      $region32: #{_lambda_.3} parent=11 // pred_fallthru
        _
      // Predicated region
      $region33: #{_lambda_.3} parent=11 // pred_check
        %p292 = pneg %p194
      $region34: #{_lambda_.3} parent=11 // pred_check_branch
        %294 = sbr.rel (%p292) target = $region36
      $region35: #{_lambda_.3} parent=11 // pred_region
        _
      $region36: #{_lambda_.3} parent=11 // pred_fallthru
        _
      // Predicated region
      $region37: #{_lambda_.3} parent=11 // pred_check
        %p295 = pneg %p215
      $region38: #{_lambda_.3} parent=11 // pred_check_branch
        %297 = sbr.rel (%p295) target = $region40
      $region39: #{_lambda_.3} parent=11 // pred_region
        _
      $region40: #{_lambda_.3} parent=11 // pred_fallthru
        _
      // Predicated region
      $region41: #{_lambda_.3} parent=11 // pred_check
        %p298 = pneg %p236
      $region42: #{_lambda_.3} parent=11 // pred_check_branch
        %300 = sbr.rel (%p298) target = $region44
      $region43: #{_lambda_.3} parent=11 // pred_region
        _
      $region44: #{_lambda_.3} parent=11 // pred_fallthru
        _
    $region12: #{_lambda_.3} parent=5 // pred_fallthru
      _
    %p301 = scmp.lt.s32.totalorder %s16, 2
    // Predicated region
    $region45: #{_lambda_.3} parent=5 // pred_check
      %p302 = pneg %p301
    $region46: #{_lambda_.3} parent=5 // pred_check_branch
      %304 = sbr.rel (%p302) target = $region48
    $region47: #{_lambda_.3} parent=5 // pred_region
      // Predicated region
      $region49: #{_lambda_.3} parent=47 // pred_check
        %p305 = pneg %p36
      $region50: #{_lambda_.3} parent=47 // pred_check_branch
        %307 = sbr.rel (%p305) target = $region52
      $region51: #{_lambda_.3} parent=47 // pred_region
        %p308 = scmp.lt.s32.totalorder %s16, 1
        %s309 = scalar_select %p308, %s16, 1
        %s310 = smul.addr %s309, 2
        %s311 = smul.addr %s310, 8
        %s312 = scalar_lea.vmem %s0, %s311
      $region52: #{_lambda_.3} parent=47 // pred_fallthru
        _
      // Predicated region
      $region53: #{_lambda_.3} parent=47 // pred_check
        %p313 = pneg %p62
      $region54: #{_lambda_.3} parent=47 // pred_check_branch
        %315 = sbr.rel (%p313) target = $region56
      $region55: #{_lambda_.3} parent=47 // pred_region
        %p316 = scmp.lt.s32.totalorder %s16, 1
        %s317 = scalar_select %p316, %s16, 1
        %s318 = smul.addr %s317, 2
        %s319 = smul.addr %s318, 8
        %s320 = scalar_lea.vmem %s1, %s319
      $region56: #{_lambda_.3} parent=47 // pred_fallthru
        _
    $region48: #{_lambda_.3} parent=5 // pred_fallthru
      _
    %p321 = scmp.le.s32.totalorder 1, %s16
    %p322 = scmp.lt.s32.totalorder %s16, 3
    %p323 = pnand %p321, %p322
    %p324 = pneg %p323
    // Predicated region
    $region57: #{_lambda_.3} parent=5 // pred_check
      _
    $region58: #{_lambda_.3} parent=5 // pred_check_branch
      %326 = sbr.rel (%p323) target = $region60
    $region59: #{_lambda_.3} parent=5 // pred_region
      %s327 = ssub.s32 %s16, 1
      %p328 = scmp.lt.s32.totalorder %s21, 1
      %s329 = scalar_select %p328, %s21, 1
      %s330 = smul.addr %s329, 2
      %s331 = smul.addr %s330, 8
      %s332 = scalar_lea.vmem %s0, %s331
      %p333 = pneg %p42
      %p334 = pneg %p39
      %p335 = scmp.lt.s32.totalorder %s21, 1
      %s336 = scalar_select %p335, %s21, 1
      %s337 = smul.addr %s336, 2
      %s338 = smul.addr %s337, 8
      %s339 = scalar_lea.vmem %s1, %s338
      %p340 = pneg %p68
      %p341 = pneg %p65
      %p342 = pneg %p89
      %p343 = pneg %p86
      %p344 = pneg %p110
      %p345 = pneg %p107
      %p346 = pneg %p131
      %p347 = pneg %p128
      %p348 = pneg %p152
      %p349 = pneg %p149
      %p350 = pneg %p173
      %p351 = pneg %p170
      %p352 = pneg %p194
      %p353 = pneg %p191
      %p354 = pneg %p215
      %p355 = pneg %p212
      %p356 = pneg %p236
      %p357 = pneg %p233
      %p358 = pneg %p262
      %p359 = pneg %p259
      %p360 = scmp.lt.s32.totalorder %s21, 1
      %s361 = scalar_select %p360, %s21, 1
      %s362 = smul.addr %s361, 2
      %s363 = smul.addr %s362, 4
      %s364 = scalar_lea.vmem %s10, %s363
      %p365 = scmp.lt.s32.totalorder %s21, 1
      %s366 = scalar_select %p365, %s21, 1
      %s367 = smul.addr %s366, 2
      %s368 = smul.addr %s367, 8
      %s369 = scalar_lea.vmem %s0, %s368
      %p370 = scmp.lt.s32.totalorder %s21, 1
      %s371 = scalar_select %p370, %s21, 1
      %s372 = smul.addr %s371, 2
      %s373 = smul.addr %s372, 8
      %s374 = scalar_lea.vmem %s1, %s373
      %p375 = scmp.lt.s32.totalorder %s21, 1
      %s376 = scalar_select %p375, %s21, 1
      %s377 = smul.addr %s376, 2
      %s378 = smul.addr %s377, 4
      %s379 = scalar_lea.vmem %s10, %s378
      %v380 = vld [vmem:[%s369] sm:$0xff]
      %v381 = vld [vmem:[%s369 + $0x8] sm:$0xff]
      %v382 = vld [vmem:[%s3] sm:$0xff]
      %v383 = vld [vmem:[%s2] sm:$0xff]
      %v384 = vld [vmem:[%s2 + $0x8] sm:$0xff]
      %v385 = vld [vmem:[%s2 + $0x10] sm:$0x1]
      %v386 = vld [vmem:[%s2 + $0x18] sm:$0x1]
      %387 = vrot.lane.b32.xlu0 %v380, 17
      %v388 = vpop.permute.xlu0 %387
      %389 = vrot.lane.b32.xlu0 %v381, 17
      %v390 = vpop.permute.xlu0 %389
      %v391 = vlaneseq
      %v392 = vand.u32 %v391, 127
      %vm393 = vcmp.lt.s32.totalorder %v392, 17
      %v394 = vsel %vm393, %v388, %v390
      %v395 = vsel %vm393, %v390, %v388
      %v396 = vlaneseq
      %v397 = vshrl.u32 %v396, 7
      %v398 = vsub.s32 0, %v397
      %v399 = vrot.slane %v383, %v398
      %v400 = vlaneseq
      %v401 = vshrl.u32 %v400, 7
      %v402 = vsub.s32 0, %v401
      %v403 = vrot.slane %v384, %v402
      %v404 = vmul.f32 %v395, %v399
      %v405 = vmul.f32 %v394, %v403
      %406 = vrot.lane.b32.xlu0 %v380, 16
      %v407 = vpop.permute.xlu0 %406
      %408 = vrot.lane.b32.xlu0 %v381, 16
      %v409 = vpop.permute.xlu0 %408
      %vm410 = vcmp.lt.s32.totalorder %v392, 16
      %v411 = vsel %vm410, %v407, %v409
      %v412 = vsel %vm410, %v409, %v407
      %v413 = vlaneseq
      %v414 = vshrl.u32 %v413, 7
      %v415 = vsub.s32 1, %v414
      %v416 = vrot.slane %v383, %v415
      %v417 = vlaneseq
      %v418 = vshrl.u32 %v417, 7
      %v419 = vsub.s32 1, %v418
      %v420 = vrot.slane %v384, %v419
      %v421 = vmul.f32 %v412, %v416
      %v422 = vmul.f32 %v411, %v420
      %423 = vrot.lane.b32.xlu0 %v380, 15
      %v424 = vpop.permute.xlu0 %423
      %425 = vrot.lane.b32.xlu0 %v381, 15
      %v426 = vpop.permute.xlu0 %425
      %vm427 = vcmp.lt.s32.totalorder %v392, 15
      %v428 = vsel %vm427, %v424, %v426
      %v429 = vsel %vm427, %v426, %v424
      %v430 = vlaneseq
      %v431 = vshrl.u32 %v430, 7
      %v432 = vsub.s32 2, %v431
      %v433 = vrot.slane %v383, %v432
      %v434 = vlaneseq
      %v435 = vshrl.u32 %v434, 7
      %v436 = vsub.s32 2, %v435
      %v437 = vrot.slane %v384, %v436
      %v438 = vmul.f32 %v429, %v433
      %v439 = vmul.f32 %v428, %v437
      %440 = vrot.lane.b32.xlu0 %v380, 1
      %v441 = vpop.permute.xlu0 %440
      %442 = vrot.lane.b32.xlu0 %v381, 1
      %v443 = vpop.permute.xlu0 %442
      %vm444 = vcmp.lt.s32.totalorder %v392, 1
      %v445 = vsel %vm444, %v441, %v443
      %v446 = vsel %vm444, %v443, %v441
      %v447 = vlaneseq
      %v448 = vshrl.u32 %v447, 7
      %v449 = vsub.s32 3, %v448
      %v450 = vrot.slane %v383, %v449
      %v451 = vlaneseq
      %v452 = vshrl.u32 %v451, 7
      %v453 = vsub.s32 3, %v452
      %v454 = vrot.slane %v384, %v453
      %v455 = vmul.f32 %v446, %v450
      %v456 = vmul.f32 %v445, %v454
      %457 = vrot.lane.b32.xlu0 %v380, 127
      %v458 = vpop.permute.xlu0 %457
      %459 = vrot.lane.b32.xlu0 %v381, 127
      %v460 = vpop.permute.xlu0 %459
      %vm461 = vcmp.lt.s32.totalorder %v392, 127
      %v462 = vsel %vm461, %v458, %v460
      %v463 = vsel %vm461, %v460, %v458
      %v464 = vlaneseq
      %v465 = vshrl.u32 %v464, 7
      %v466 = vsub.s32 5, %v465
      %v467 = vrot.slane %v383, %v466
      %v468 = vlaneseq
      %v469 = vshrl.u32 %v468, 7
      %v470 = vsub.s32 5, %v469
      %v471 = vrot.slane %v384, %v470
      %v472 = vmul.f32 %v462, %v467
      %v473 = vmul.f32 %v463, %v471
      %474 = vrot.lane.b32.xlu0 %v380, 113
      %v475 = vpop.permute.xlu0 %474
      %476 = vrot.lane.b32.xlu0 %v381, 113
      %v477 = vpop.permute.xlu0 %476
      %vm478 = vcmp.lt.s32.totalorder %v392, 113
      %v479 = vsel %vm478, %v475, %v477
      %v480 = vsel %vm478, %v477, %v475
      %v481 = vlaneseq
      %v482 = vshrl.u32 %v481, 7
      %v483 = vsub.s32 6, %v482
      %v484 = vrot.slane %v383, %v483
      %v485 = vlaneseq
      %v486 = vshrl.u32 %v485, 7
      %v487 = vsub.s32 6, %v486
      %v488 = vrot.slane %v384, %v487
      %v489 = vmul.f32 %v479, %v484
      %v490 = vmul.f32 %v480, %v488
      %491 = vrot.lane.b32.xlu0 %v380, 112
      %v492 = vpop.permute.xlu0 %491
      %493 = vrot.lane.b32.xlu0 %v381, 112
      %v494 = vpop.permute.xlu0 %493
      %vm495 = vcmp.lt.s32.totalorder %v392, 112
      %v496 = vsel %vm495, %v492, %v494
      %v497 = vsel %vm495, %v494, %v492
      %v498 = vlaneseq
      %v499 = vshrl.u32 %v498, 7
      %v500 = vsub.s32 7, %v499
      %v501 = vrot.slane %v383, %v500
      %v502 = vlaneseq
      %v503 = vshrl.u32 %v502, 7
      %v504 = vsub.s32 7, %v503
      %v505 = vrot.slane %v384, %v504
      %v506 = vmul.f32 %v496, %v501
      %v507 = vmul.f32 %v497, %v505
      %508 = vrot.lane.b32.xlu0 %v380, 111
      %v509 = vpop.permute.xlu0 %508
      %510 = vrot.lane.b32.xlu0 %v381, 111
      %v511 = vpop.permute.xlu0 %510
      %vm512 = vcmp.lt.s32.totalorder %v392, 111
      %v513 = vsel %vm512, %v509, %v511
      %v514 = vsel %vm512, %v511, %v509
      %v515 = vlaneseq
      %v516 = vshrl.u32 %v515, 7
      %v517 = vsub.s32 0, %v516
      %v518 = vrot.slane %v385, %v517
      %v519 = vlaneseq
      %v520 = vshrl.u32 %v519, 7
      %v521 = vsub.s32 0, %v520
      %v522 = vrot.slane %v386, %v521
      %v523 = vmul.f32 %v513, %v518
      %v524 = vmul.f32 %v514, %v522
      %v525 = vld [vmem:[%s374] sm:$0xff]
      %v526 = vld [vmem:[%s374 + $0x8] sm:$0xff]
      %v527 = vld [vmem:[%s4] sm:$0xff]
      %528 = vrot.lane.b32.xlu0 %v525, 17
      %v529 = vpop.permute.xlu0 %528
      %530 = vrot.lane.b32.xlu0 %v526, 17
      %v531 = vpop.permute.xlu0 %530
      %v532 = vsel %vm393, %v529, %v531
      %v533 = vsel %vm393, %v531, %v529
      %v534 = vmul.f32 %v533, %v399
      %v535 = vmul.f32 %v532, %v403
      %536 = vrot.lane.b32.xlu0 %v525, 16
      %v537 = vpop.permute.xlu0 %536
      %538 = vrot.lane.b32.xlu0 %v526, 16
      %v539 = vpop.permute.xlu0 %538
      %v540 = vsel %vm410, %v537, %v539
      %v541 = vsel %vm410, %v539, %v537
      %v542 = vmul.f32 %v541, %v416
      %v543 = vmul.f32 %v540, %v420
      %544 = vrot.lane.b32.xlu0 %v525, 15
      %v545 = vpop.permute.xlu0 %544
      %546 = vrot.lane.b32.xlu0 %v526, 15
      %v547 = vpop.permute.xlu0 %546
      %v548 = vsel %vm427, %v545, %v547
      %v549 = vsel %vm427, %v547, %v545
      %v550 = vmul.f32 %v549, %v433
      %v551 = vmul.f32 %v548, %v437
      %552 = vrot.lane.b32.xlu0 %v525, 1
      %v553 = vpop.permute.xlu0 %552
      %554 = vrot.lane.b32.xlu0 %v526, 1
      %v555 = vpop.permute.xlu0 %554
      %v556 = vsel %vm444, %v553, %v555
      %v557 = vsel %vm444, %v555, %v553
      %v558 = vmul.f32 %v557, %v450
      %v559 = vmul.f32 %v556, %v454
      %560 = vrot.lane.b32.xlu0 %v525, 127
      %v561 = vpop.permute.xlu0 %560
      %562 = vrot.lane.b32.xlu0 %v526, 127
      %v563 = vpop.permute.xlu0 %562
      %v564 = vsel %vm461, %v561, %v563
      %v565 = vsel %vm461, %v563, %v561
      %v566 = vmul.f32 %v564, %v467
      %v567 = vmul.f32 %v565, %v471
      %568 = vrot.lane.b32.xlu0 %v525, 113
      %v569 = vpop.permute.xlu0 %568
      %570 = vrot.lane.b32.xlu0 %v526, 113
      %v571 = vpop.permute.xlu0 %570
      %v572 = vsel %vm478, %v569, %v571
      %v573 = vsel %vm478, %v571, %v569
      %v574 = vmul.f32 %v572, %v484
      %v575 = vmul.f32 %v573, %v488
      %576 = vrot.lane.b32.xlu0 %v525, 112
      %v577 = vpop.permute.xlu0 %576
      %578 = vrot.lane.b32.xlu0 %v526, 112
      %v579 = vpop.permute.xlu0 %578
      %v580 = vsel %vm495, %v577, %v579
      %v581 = vsel %vm495, %v579, %v577
      %v582 = vmul.f32 %v580, %v501
      %v583 = vmul.f32 %v581, %v505
      %584 = vrot.lane.b32.xlu0 %v525, 111
      %v585 = vpop.permute.xlu0 %584
      %586 = vrot.lane.b32.xlu0 %v526, 111
      %v587 = vpop.permute.xlu0 %586
      %v588 = vsel %vm512, %v585, %v587
      %v589 = vsel %vm512, %v587, %v585
      %v590 = vmul.f32 %v588, %v518
      %v591 = vmul.f32 %v589, %v522
      %vm592 = vcmask 588800
      %v594 = vsel %vm592, %v527, 0
      %596 = vmatprep.subr.mxu0 %v535
      %597 = vmatpush1.msra.mxu0 %v534
      %598 = vmatprep.subr.mxu0 %v543
      %599 = vmatpush1.msra.mxu0 %v542
      %600 = vmatprep.subr.mxu0 %v551
      %601 = vmatpush1.msra.mxu0 %v550
      %602 = vmatprep.subr.mxu0 %v559
      %603 = vmatpush1.msra.mxu0 %v558
      %604 = vmatprep.subr.mxu0 %v526
      %605 = vmatpush1.msra.mxu0 %v525
      %606 = vmatprep.subr.mxu0 %v567
      %607 = vmatpush1.msra.mxu0 %v566
      %608 = vmatprep.subr.mxu0 %v575
      %609 = vmatpush1.msra.mxu0 %v574
      %610 = vmatprep.subr.mxu0 %v583
      %611 = vmatpush1.msra.mxu0 %v582
      %612 = vmatprep.subr.mxu0 %v591
      %613 = vmatpush1.msra.mxu0 %v590
      %614 = vmatprep.subr.mxu0 0.0
      %615 = vmatpush1.msra.mxu0 0.0
      %616 = vmatprep.subr.mxu0 0.0
      %617 = vmatpush1.msra.mxu0 0.0
      %618 = vmatprep.subr.mxu0 0.0
      %619 = vmatpush1.msra.mxu0 0.0
      %620 = vmatprep.subr.mxu0 0.0
      %621 = vmatpush1.msra.mxu0 0.0
      %622 = vmatprep.subr.mxu0 0.0
      %623 = vmatpush1.msra.mxu0 0.0
      %624 = vmatprep.subr.mxu0 0.0
      %625 = vmatpush1.msra.mxu0 0.0
      %626 = vmatprep.subr.mxu0 0.0
      %627 = vmatpush1.msra.mxu0 0.0
      %628 = vmatprep.subr.mxu0 0.0
      %629 = vmatpush1.msra.mxu0 0.0
      %630 = vmatprep.subr.mxu0 0.0
      %631 = vmatpush1.msra.mxu0 0.0
      %632 = vmatprep.subr.mxu0 0.0
      %633 = vmatpush1.msra.mxu0 0.0
      %634 = vmatprep.subr.mxu0 0.0
      %635 = vmatpush1.msra.mxu0 0.0
      %636 = vmatprep.subr.mxu0 0.0
      %637 = vmatpush1.msra.mxu0 0.0
      %638 = vmatprep.subr.mxu0 0.0
      %639 = vmatpush1.msra.mxu0 0.0
      %640 = vmatprep.subr.mxu0 0.0
      %641 = vmatpush1.msra.mxu0 0.0
      %642 = vmatprep.subr.mxu0 0.0
      %643 = vmatpush1.msra.mxu0 0.0
      %644 = vmatprep.subr.mxu0 0.0
      %645 = vmatpush1.msra.mxu0 0.0
      %646 = vmatprep.subr.mxu0 0.0
      %647 = vmatpush1.msra.mxu0 0.0
      %648 = vmatprep.subr.mxu0 0.0
      %649 = vmatpush1.msra.mxu0 0.0
      %650 = vmatprep.subr.mxu0 0.0
      %651 = vmatpush1.msra.mxu0 0.0
      %652 = vmatprep.subr.mxu0 0.0
      %653 = vmatpush1.msra.mxu0 0.0
      %654 = vmatprep.subr.mxu0 0.0
      %655 = vmatpush1.msra.mxu0 0.0
      %656 = vmatprep.subr.mxu0 0.0
      %657 = vmatpush1.msra.mxu0 0.0
      %658 = vmatprep.subr.mxu0 0.0
      %659 = vmatpush1.msra.mxu0 0.0
      %660 = vmatprep.mubr.f32.mxu0 0.0
      %661 = vmatmul.mubr.f32.gmra.mrb[0].mxu0 %v594
      %v662 = vpop.f32.mrb[0].mxu0
      %v663 = vadd.f32 0.0, %v662
      %v664 = vpop.f32.mrb[0].mxu0
      %v665 = vadd.f32 0.0, %v664
      %666 = vdwg.mxu0
      %v668 = vsel %vm592, %v382, 0
      %670 = vmatprep.subr.mxu0 %v405
      %671 = vmatpush1.msra.mxu0 %v404
      %672 = vmatprep.subr.mxu0 %v422
      %673 = vmatpush1.msra.mxu0 %v421
      %674 = vmatprep.subr.mxu0 %v439
      %675 = vmatpush1.msra.mxu0 %v438
      %676 = vmatprep.subr.mxu0 %v456
      %677 = vmatpush1.msra.mxu0 %v455
      %678 = vmatprep.subr.mxu0 %v381
      %679 = vmatpush1.msra.mxu0 %v380
      %680 = vmatprep.subr.mxu0 %v473
      %681 = vmatpush1.msra.mxu0 %v472
      %682 = vmatprep.subr.mxu0 %v490
      %683 = vmatpush1.msra.mxu0 %v489
      %684 = vmatprep.subr.mxu0 %v507
      %685 = vmatpush1.msra.mxu0 %v506
      %686 = vmatprep.subr.mxu0 %v524
      %687 = vmatpush1.msra.mxu0 %v523
      %688 = vmatprep.subr.mxu0 0.0
      %689 = vmatpush1.msra.mxu0 0.0
      %690 = vmatprep.subr.mxu0 0.0
      %691 = vmatpush1.msra.mxu0 0.0
      %692 = vmatprep.subr.mxu0 0.0
      %693 = vmatpush1.msra.mxu0 0.0
      %694 = vmatprep.subr.mxu0 0.0
      %695 = vmatpush1.msra.mxu0 0.0
      %696 = vmatprep.subr.mxu0 0.0
      %697 = vmatpush1.msra.mxu0 0.0
      %698 = vmatprep.subr.mxu0 0.0
      %699 = vmatpush1.msra.mxu0 0.0
      %700 = vmatprep.subr.mxu0 0.0
      %701 = vmatpush1.msra.mxu0 0.0
      %702 = vmatprep.subr.mxu0 0.0
      %703 = vmatpush1.msra.mxu0 0.0
      %704 = vmatprep.subr.mxu0 0.0
      %705 = vmatpush1.msra.mxu0 0.0
      %706 = vmatprep.subr.mxu0 0.0
      %707 = vmatpush1.msra.mxu0 0.0
      %708 = vmatprep.subr.mxu0 0.0
      %709 = vmatpush1.msra.mxu0 0.0
      %710 = vmatprep.subr.mxu0 0.0
      %711 = vmatpush1.msra.mxu0 0.0
      %712 = vmatprep.subr.mxu0 0.0
      %713 = vmatpush1.msra.mxu0 0.0
      %714 = vmatprep.subr.mxu0 0.0
      %715 = vmatpush1.msra.mxu0 0.0
      %716 = vmatprep.subr.mxu0 0.0
      %717 = vmatpush1.msra.mxu0 0.0
      %718 = vmatprep.subr.mxu0 0.0
      %719 = vmatpush1.msra.mxu0 0.0
      %720 = vmatprep.subr.mxu0 0.0
      %721 = vmatpush1.msra.mxu0 0.0
      %722 = vmatprep.subr.mxu0 0.0
      %723 = vmatpush1.msra.mxu0 0.0
      %724 = vmatprep.subr.mxu0 0.0
      %725 = vmatpush1.msra.mxu0 0.0
      %726 = vmatprep.subr.mxu0 0.0
      %727 = vmatpush1.msra.mxu0 0.0
      %728 = vmatprep.subr.mxu0 0.0
      %729 = vmatpush1.msra.mxu0 0.0
      %730 = vmatprep.subr.mxu0 0.0
      %731 = vmatpush1.msra.mxu0 0.0
      %732 = vmatprep.subr.mxu0 0.0
      %733 = vmatpush1.msra.mxu0 0.0
      %734 = vmatprep.mubr.f32.mxu0 0.0
      %735 = vmatmul.mubr.f32.gmra.mrb[0].mxu0 %v668
      %v736 = vpop.f32.mrb[0].mxu0
      %v737 = vadd.f32 %v663, %v736
      %v738 = vpop.f32.mrb[0].mxu0
      %v739 = vadd.f32 %v665, %v738
      %740 = vdwg.mxu0
      %v741 = vld [vmem:[%s5] sm:$0xff]
      %743 = vset.pattern.permute.xlu0 0
      %744 = vperm.xlu0 %743, %v741
      %v745 = vpop.permute.xlu0 %744
      %v747 = vadd.f32 %v737, %v745
      %v748 = vadd.f32 %v739, %v745
      %v749 = vld [vmem:[%s6] sm:$0xff]
      %v750 = vld [vmem:[%s7] sm:$0xff]
      %vm751 = vcmask 1043456
      %v752 = vsel %vm751, %v747, 0.0
      %v753 = vsel %vm751, %v748, 0.0
      %v754 = vadd.f32 %v752, %v753
      %755 = vadd.xlane.f32.xlu0 %v754
      %v756 = vpop.xlane.xlu0 %755
      %v757 = vrot.slane %v756, 4
      %v758 = vadd.f32 %v756, %v757
      %v759 = vrot.slane %v758, 2
      %v760 = vadd.f32 %v758, %v759
      %v761 = vrot.slane %v760, 1
      %v762 = vadd.f32 %v760, %v761
      %s763 = vtos %v762
      %v764 = vrcp.pop 1024.0
      %s765 = vtos %v764
      %s766 = smul.f32 %s763, %s765
      %v769 = vrot.slane %v747, 4
      %v770 = vrot.slane %v748, 4
      %v773 = vsel %vm751, %v769, 0.0
      %v774 = vsel %vm751, %v770, 0.0
      %v775 = vadd.f32 %v773, %v774
      %776 = vadd.xlane.f32.xlu0 %v775
      %v777 = vpop.xlane.xlu0 %776
      %v778 = vrot.slane %v777, 4
      %v779 = vadd.f32 %v777, %v778
      %v780 = vrot.slane %v779, 2
      %v781 = vadd.f32 %v779, %v780
      %v782 = vrot.slane %v781, 1
      %v783 = vadd.f32 %v781, %v782
      %s784 = vtos %v783
      %v785 = vrcp.pop 1024.0
      %s786 = vtos %v785
      %s787 = smul.f32 %s784, %s786
      %v788 = vmul.f32 %v747, %v747
      %v789 = vmul.f32 %v748, %v748
      %v790 = vsel %vm751, %v788, 0.0
      %v791 = vsel %vm751, %v789, 0.0
      %v792 = vadd.f32 %v790, %v791
      %793 = vadd.xlane.f32.xlu0 %v792
      %v794 = vpop.xlane.xlu0 %793
      %v795 = vrot.slane %v794, 4
      %v796 = vadd.f32 %v794, %v795
      %v797 = vrot.slane %v796, 2
      %v798 = vadd.f32 %v796, %v797
      %v799 = vrot.slane %v798, 1
      %v800 = vadd.f32 %v798, %v799
      %s801 = vtos %v800
      %v802 = vrcp.pop 1024.0
      %s803 = vtos %v802
      %s804 = smul.f32 %s801, %s803
      %s805 = smul.f32 %s766, %s766
      %s806 = ssub.f32 %s804, %s805
      %s807 = smax.f32 %s806, 0.0
      %v810 = vrot.slane %v788, 4
      %v811 = vrot.slane %v789, 4
      %v814 = vsel %vm751, %v810, 0.0
      %v815 = vsel %vm751, %v811, 0.0
      %v816 = vadd.f32 %v814, %v815
      %817 = vadd.xlane.f32.xlu0 %v816
      %v818 = vpop.xlane.xlu0 %817
      %v819 = vrot.slane %v818, 4
      %v820 = vadd.f32 %v818, %v819
      %v821 = vrot.slane %v820, 2
      %v822 = vadd.f32 %v820, %v821
      %v823 = vrot.slane %v822, 1
      %v824 = vadd.f32 %v822, %v823
      %s825 = vtos %v824
      %v826 = vrcp.pop 1024.0
      %s827 = vtos %v826
      %s828 = smul.f32 %s825, %s827
      %s829 = smul.f32 %s787, %s787
      %s830 = ssub.f32 %s828, %s829
      %s831 = smax.f32 %s830, 0.0
      %v832 = vlaneseq
      %v833 = vshrl.u32 %v832, 7
      %vm834 = vcmp.lt.s32.totalorder %v833, 4
      %v835 = vstv %s766
      %v836 = vstv %s787
      %v837 = vsel %vm834, %v835, %v836
      %s838 = sadd.f32 %s807, 1e-05
      %v839 = vstv %s838
      %v840 = vrsqrt.pop %v839
      %s841 = vtos %v840
      %s842 = sadd.f32 %s831, 1e-05
      %v843 = vstv %s842
      %v844 = vrsqrt.pop %v843
      %s845 = vtos %v844
      %v846 = vstv %s841
      %v847 = vstv %s845
      %v848 = vsel %vm834, %v846, %v847
      %v849 = vsub.f32 %v747, %v837
      %v850 = vsub.f32 %v748, %v837
      %v851 = vmul.f32 %v849, %v848
      %v852 = vmul.f32 %v850, %v848
      %854 = vset.pattern.permute.xlu0 0
      %855 = vperm.xlu0 %854, %v749
      %v856 = vpop.permute.xlu0 %855
      %v858 = vmul.f32 %v851, %v856
      %v859 = vmul.f32 %v852, %v856
      %861 = vset.pattern.permute.xlu0 0
      %862 = vperm.xlu0 %861, %v750
      %v863 = vpop.permute.xlu0 %862
      %v865 = vadd.f32 %v858, %v863
      %v866 = vadd.f32 %v859, %v863
      %vm867 = vcmp.ge.f32.partialorder %v865, 0.0
      %vm868 = vcmp.ge.f32.partialorder %v866, 0.0
      %v869 = vmul.f32 %v865, 0.2
      %v870 = vmul.f32 %v866, 0.2
      %v871 = vsel %vm867, %v865, %v869
      %v872 = vsel %vm868, %v866, %v870
      %v873 = vld [vmem:[%s8] sm:$0xf]
      %v874 = vld [vmem:[%s9] sm:$0xf]
      %876 = vset.pattern.permute.xlu0 0
      %877 = vperm.xlu0 %876, %v874
      %v878 = vpop.permute.xlu0 %877
      %vm880 = vcmask 64512
      %v882 = vsel %vm880, %v873, 0
      %884 = vmatprep.subr.mxu0 %v872
      %885 = vmatpush1.msra.mxu0 %v871
      %886 = vmatprep.subr.mxu0 0.0
      %887 = vmatpush1.msra.mxu0 0.0
      %888 = vmatprep.subr.mxu0 0.0
      %889 = vmatpush1.msra.mxu0 0.0
      %890 = vmatprep.subr.mxu0 0.0
      %891 = vmatpush1.msra.mxu0 0.0
      %892 = vmatprep.subr.mxu0 0.0
      %893 = vmatpush1.msra.mxu0 0.0
      %894 = vmatprep.subr.mxu0 0.0
      %895 = vmatpush1.msra.mxu0 0.0
      %896 = vmatprep.subr.mxu0 0.0
      %897 = vmatpush1.msra.mxu0 0.0
      %898 = vmatprep.subr.mxu0 0.0
      %899 = vmatpush1.msra.mxu0 0.0
      %900 = vmatprep.subr.mxu0 0.0
      %901 = vmatpush1.msra.mxu0 0.0
      %902 = vmatprep.subr.mxu0 0.0
      %903 = vmatpush1.msra.mxu0 0.0
      %904 = vmatprep.subr.mxu0 0.0
      %905 = vmatpush1.msra.mxu0 0.0
      %906 = vmatprep.subr.mxu0 0.0
      %907 = vmatpush1.msra.mxu0 0.0
      %908 = vmatprep.subr.mxu0 0.0
      %909 = vmatpush1.msra.mxu0 0.0
      %910 = vmatprep.subr.mxu0 0.0
      %911 = vmatpush1.msra.mxu0 0.0
      %912 = vmatprep.subr.mxu0 0.0
      %913 = vmatpush1.msra.mxu0 0.0
      %914 = vmatprep.subr.mxu0 0.0
      %915 = vmatpush1.msra.mxu0 0.0
      %916 = vmatprep.subr.mxu0 0.0
      %917 = vmatpush1.msra.mxu0 0.0
      %918 = vmatprep.subr.mxu0 0.0
      %919 = vmatpush1.msra.mxu0 0.0
      %920 = vmatprep.subr.mxu0 0.0
      %921 = vmatpush1.msra.mxu0 0.0
      %922 = vmatprep.subr.mxu0 0.0
      %923 = vmatpush1.msra.mxu0 0.0
      %924 = vmatprep.subr.mxu0 0.0
      %925 = vmatpush1.msra.mxu0 0.0
      %926 = vmatprep.subr.mxu0 0.0
      %927 = vmatpush1.msra.mxu0 0.0
      %928 = vmatprep.subr.mxu0 0.0
      %929 = vmatpush1.msra.mxu0 0.0
      %930 = vmatprep.subr.mxu0 0.0
      %931 = vmatpush1.msra.mxu0 0.0
      %932 = vmatprep.subr.mxu0 0.0
      %933 = vmatpush1.msra.mxu0 0.0
      %934 = vmatprep.subr.mxu0 0.0
      %935 = vmatpush1.msra.mxu0 0.0
      %936 = vmatprep.subr.mxu0 0.0
      %937 = vmatpush1.msra.mxu0 0.0
      %938 = vmatprep.subr.mxu0 0.0
      %939 = vmatpush1.msra.mxu0 0.0
      %940 = vmatprep.subr.mxu0 0.0
      %941 = vmatpush1.msra.mxu0 0.0
      %942 = vmatprep.subr.mxu0 0.0
      %943 = vmatpush1.msra.mxu0 0.0
      %944 = vmatprep.subr.mxu0 0.0
      %945 = vmatpush1.msra.mxu0 0.0
      %946 = vmatprep.subr.mxu0 0.0
      %947 = vmatpush1.msra.mxu0 0.0
      %948 = vmatprep.mubr.f32.mxu0 0.0
      %949 = vmatmul.mubr.f32.gmra.mrb[0].mxu0 %v882
      %v950 = vpop.f32.mrb[0].mxu0
      %v951 = vadd.f32 %v878, %v950
      %v952 = vpop.f32.mrb[0].mxu0
      %v953 = vadd.f32 %v878, %v952
      %954 = vdwg.mxu0
      %v957 = vcombine.low %v951, %v953
      %959 = vst [vmem:[%s379] sm:$0xff] %v957
      %p960 = scmp.lt.s32.totalorder %s21, 1
      %s961 = scalar_select %p960, %s21, 1
      %s962 = smul.addr %s961, 2
      %s963 = smul.addr %s962, 4
      %s964 = scalar_lea.vmem %s10, %s963
      // Predicated region
      $region61: #{_lambda_.3} parent=59 // pred_check
        %p965 = pneg %p259
      $region62: #{_lambda_.3} parent=59 // pred_check_branch
        %967 = sbr.rel (%p965) target = $region64
      $region63: #{_lambda_.3} parent=59 // pred_region
        _
      $region64: #{_lambda_.3} parent=59 // pred_fallthru
        _
    $region60: #{_lambda_.3} parent=5 // pred_fallthru
      _
    %p968 = scmp.le.s32.totalorder 2, %s16
    // Predicated region
    $region65: #{_lambda_.3} parent=5 // pred_check
      %p969 = pneg %p968
    $region66: #{_lambda_.3} parent=5 // pred_check_branch
      %971 = sbr.rel (%p969) target = $region68
    $region67: #{_lambda_.3} parent=5 // pred_region
      %s972 = ssub.s32 %s16, 2
      // Predicated region
      $region69: #{_lambda_.3} parent=67 // pred_check
        %p973 = pneg %p265
      $region70: #{_lambda_.3} parent=67 // pred_check_branch
        %975 = sbr.rel (%p973) target = $region72
      $region71: #{_lambda_.3} parent=67 // pred_region
        %p976 = scmp.lt.s32.totalorder %s22, 1
        %s977 = scalar_select %p976, %s22, 1
        %s978 = smul.addr %s977, 2
        %s979 = smul.addr %s978, 4
        %s980 = scalar_lea.vmem %s10, %s979
      $region72: #{_lambda_.3} parent=67 // pred_fallthru
        _
    $region68: #{_lambda_.3} parent=5 // pred_fallthru
      _
  $region6: #{_lambda_.3} parent=0 // loop_footer
    %s20 = sadd.s32 1, %s16
  $region7: #{_lambda_.3} parent=0 // loop_footer_branch
    %15 = sbr.rel target = $region3
  $region8: #{_lambda_.3} parent=0 // loop_exit
    _

</llo_original>
